<compile_context>
chip_gen: v6e
topology: v6e:2x2x1
jax: 0.10.0
libtpu: 0.0.40
codegen_flags: <defaults>
</compile_context>

<pallas_src>
import math

import jax
import jax.numpy as jnp
from jax.experimental import pallas as pl
from jax.experimental.pallas import tpu as pltpu

# ---------------- model hyper-parameters (tiny BERT) ----------------
VOCAB = 64      # vocabulary size
SEQ = 8         # sequence length
HIDDEN = 32     # model width D
HEADS = 4       # attention heads
HEAD_DIM = HIDDEN // HEADS
FFN = 64        # feed-forward inner width
BATCH = 2
LN_EPS = 1e-5

VPAD = 128                   # vocab padded to a full lane tile (unmasked stores)
TOKENS = BATCH * SEQ         # batch folded into a single kernel invocation
VEC_ROWS = 16                # packed small-vector operand, sublane aligned

# rows of the packed small-vector operand (biases / layernorm params)
(_ROW_BQKV, _ROW_BO, _ROW_G1, _ROW_BE1, _ROW_BF1,
 _ROW_BF2, _ROW_G2, _ROW_BE2, _ROW_BU) = range(9)


def _layernorm(x, gamma, beta):
    mu = jnp.mean(x, axis=-1, keepdims=True)
    var = jnp.mean((x - mu) ** 2, axis=-1, keepdims=True)
    return (x - mu) * jax.lax.rsqrt(var + LN_EPS) * gamma + beta


def bert_kernel(ids_ref, emb_ref, pos_ref, wqkv_ref, wo_ref, w1_ref, w2_ref,
                wu_ref, vecs_ref, out_ref):
    f32 = jnp.float32
    bf16 = jnp.bfloat16

    # packed bias / layernorm vectors (single operand, static row slices)
    bqkv = vecs_ref[_ROW_BQKV:_ROW_BQKV + 1, :3 * HIDDEN]
    bo   = vecs_ref[_ROW_BO:_ROW_BO + 1, :HIDDEN]
    g1   = vecs_ref[_ROW_G1:_ROW_G1 + 1, :HIDDEN]
    be1  = vecs_ref[_ROW_BE1:_ROW_BE1 + 1, :HIDDEN]
    bf1  = vecs_ref[_ROW_BF1:_ROW_BF1 + 1, :FFN]
    bf2  = vecs_ref[_ROW_BF2:_ROW_BF2 + 1, :HIDDEN]
    g2   = vecs_ref[_ROW_G2:_ROW_G2 + 1, :HIDDEN]
    be2  = vecs_ref[_ROW_BE2:_ROW_BE2 + 1, :HIDDEN]
    bu   = vecs_ref[_ROW_BU:_ROW_BU + 1, :]               # (1, VPAD)

    # ---- fused embedding lookup: one-hot(ids) @ emb_table on the MXU (exact) ----
    ids = ids_ref[...]                                     # (TOKENS, 1) int32
    iota = jax.lax.broadcasted_iota(jnp.int32, (TOKENS, VOCAB), 1)
    onehot = jnp.where(ids == iota, 1.0, 0.0)              # (TOKENS, VOCAB) f32
    x = jnp.dot(onehot, emb_ref[...], preferred_element_type=f32) + pos_ref[...]

    # ---- fused QKV projection: ONE (16,32)x(32,96) matmul, bf16 MXU inputs ----
    qkv = jnp.dot(x.astype(bf16), wqkv_ref[...], preferred_element_type=f32) + bqkv

    # ---- attention core: tiny (B,8,8) per head, f32 (negligible at SEQ=8) ----
    scale = 1.0 / math.sqrt(HEAD_DIM)
    head_outs = []
    for h in range(HEADS):
        lo = h * HEAD_DIM
        q = qkv[:, lo:lo + HEAD_DIM].reshape(BATCH, SEQ, HEAD_DIM)
        k = qkv[:, HIDDEN + lo:HIDDEN + lo + HEAD_DIM].reshape(BATCH, SEQ, HEAD_DIM)
        v = qkv[:, 2 * HIDDEN + lo:2 * HIDDEN + lo + HEAD_DIM].reshape(BATCH, SEQ, HEAD_DIM)
        s = jnp.einsum('bqe,bke->bqk', q, k, preferred_element_type=f32) * scale
        s = s - jnp.max(s, axis=-1, keepdims=True)
        p = jnp.exp(s)
        p = p / jnp.sum(p, axis=-1, keepdims=True)          # exact reciprocal (EUP)
        ao_h = jnp.einsum('bqk,bke->bqe', p, v, preferred_element_type=f32)
        head_outs.append(ao_h.reshape(TOKENS, HEAD_DIM))
    ao = jnp.concatenate(head_outs, axis=-1)                # (TOKENS, HIDDEN)

    # ---- output projection: ONE (16,32)x(32,32) matmul (head reduction is the
    #      contraction itself) ----
    attn = jnp.dot(ao.astype(bf16), wo_ref[...], preferred_element_type=f32) + bo

    h1 = _layernorm(x + attn, g1, be1)                      # residual + post-LN (f32)

    # ---- feed-forward ----
    ff = jnp.dot(h1.astype(bf16), w1_ref[...], preferred_element_type=f32) + bf1
    ff = jax.nn.gelu(ff)
    ff = jnp.dot(ff.astype(bf16), w2_ref[...], preferred_element_type=f32) + bf2
    h2 = _layernorm(h1 + ff, g2, be2)

    # ---- unembedding, lane-dense (V padded to 128, unmasked stores) ----
    logits = jnp.dot(h2.astype(bf16), wu_ref[...], preferred_element_type=f32) + bu
    out_ref[...] = logits.astype(out_ref.dtype)


def pack_params(params):
    """One-time repack of PyTorch-style weights into the kernel operand layout.

    Hoisted out of the per-forward path (perf review: repacking cost > kernel).
    Weights are stored bf16 (MXU-native on v6e/v7x, half the DMA bytes); the
    embedding table and all biases / LN params stay f32.
    """
    bf16 = jnp.bfloat16

    # fused QKV weight, natural (D, 3D) layout; head h owns lanes [h*hd,(h+1)*hd)
    wqkv = jnp.concatenate([params["wq"], params["wk"], params["wv"]], axis=1)
    bqkv = jnp.concatenate([params["bq"], params["bk"], params["bv"]], axis=1)[0]

    vecs = jnp.zeros((VEC_ROWS, VPAD), jnp.float32)
    vecs = vecs.at[_ROW_BQKV, :3 * HIDDEN].set(bqkv)
    vecs = vecs.at[_ROW_BO, :HIDDEN].set(params["bo"][0])
    vecs = vecs.at[_ROW_G1, :HIDDEN].set(params["g1"][0])
    vecs = vecs.at[_ROW_BE1, :HIDDEN].set(params["be1"][0])
    vecs = vecs.at[_ROW_BF1, :FFN].set(params["bf1"][0])
    vecs = vecs.at[_ROW_BF2, :HIDDEN].set(params["bf2"][0])
    vecs = vecs.at[_ROW_G2, :HIDDEN].set(params["g2"][0])
    vecs = vecs.at[_ROW_BE2, :HIDDEN].set(params["be2"][0])
    vecs = vecs.at[_ROW_BU, :VOCAB].set(params["bu"][0])

    wu_pad = jnp.zeros((HIDDEN, VPAD), jnp.float32).at[:, :VOCAB].set(params["wu"])

    return {
        "emb": params["emb_table"].astype(jnp.float32),                 # (V, D)
        "pos": jnp.tile(params["pos_table"], (BATCH, 1)).astype(jnp.float32),  # (T, D)
        "wqkv": wqkv.astype(bf16),                                      # (D, 3D)
        "wo": params["wo"].astype(bf16),                                # (D, D)
        "w1": params["w1"].astype(bf16),                                # (D, FFN)
        "w2": params["w2"].astype(bf16),                                # (FFN, D)
        "wu": wu_pad.astype(bf16),                                      # (D, VPAD)
        "vecs": vecs,                                                   # (16, VPAD)
    }


def _bert_forward(token_ids, packed):
    ids = token_ids.reshape(TOKENS, 1).astype(jnp.int32)

    def full(arr):
        shape = arr.shape
        return pl.BlockSpec(shape, lambda i, _n=len(shape): (0,) * _n)

    operands = (ids, packed["emb"], packed["pos"], packed["wqkv"], packed["wo"],
                packed["w1"], packed["w2"], packed["wu"], packed["vecs"])

    grid_spec = pltpu.PrefetchScalarGridSpec(
        num_scalar_prefetch=0,
        grid=(1,),                      # everything resident; tiny footprint
        in_specs=[full(a) for a in operands],
        out_specs=pl.BlockSpec((TOKENS, VPAD), lambda i: (0, 0)),
    )
    out = pl.pallas_call(
        bert_kernel,
        out_shape=jax.ShapeDtypeStruct((TOKENS, VPAD), jnp.float32),
        grid_spec=grid_spec,
        compiler_params=pltpu.CompilerParams(dimension_semantics=("arbitrary",)),
    )(*operands)
    return out.reshape(BATCH, SEQ, VPAD)[:, :, :VOCAB]


bert_forward = jax.jit(_bert_forward)


def bert_reference(token_ids, params):
    """Pure-JAX f32 reference of the same forward pass (for numeric check)."""
    x = params["emb_table"][token_ids] + params["pos_table"][None]
    q = x @ params["wq"] + params["bq"]
    k = x @ params["wk"] + params["bk"]
    v = x @ params["wv"] + params["bv"]

    def split(t):  # (B,S,D) -> (B,H,S,hd)
        return t.reshape(t.shape[0], t.shape[1], HEADS, HEAD_DIM).transpose(0, 2, 1, 3)

    qh, kh, vh = split(q), split(k), split(v)
    s = jnp.einsum("bhqd,bhkd->bhqk", qh, kh) / math.sqrt(HEAD_DIM)
    p = jax.nn.softmax(s, axis=-1)
    a = jnp.einsum("bhqk,bhkd->bhqd", p, vh).transpose(0, 2, 1, 3).reshape(x.shape)
    a = a @ params["wo"] + params["bo"]

    def ln(t, g, b):
        mu = t.mean(-1, keepdims=True)
        var = ((t - mu) ** 2).mean(-1, keepdims=True)
        return (t - mu) * jax.lax.rsqrt(var + LN_EPS) * g + b

    h1 = ln(x + a, params["g1"], params["be1"])
    ff = jax.nn.gelu(h1 @ params["w1"] + params["bf1"]) @ params["w2"] + params["bf2"]
    h2 = ln(h1 + ff, params["g2"], params["be2"])
    return h2 @ params["wu"] + params["bu"]


def init_params(key):
    ks = jax.random.split(key, 24)
    n = lambda k, shape, s=0.02: (s * jax.random.normal(k, shape)).astype(jnp.float32)
    return {
        "emb_table": n(ks[0], (VOCAB, HIDDEN)),
        "pos_table": n(ks[1], (SEQ, HIDDEN)),
        "wq": n(ks[2], (HIDDEN, HIDDEN)), "bq": n(ks[9], (1, HIDDEN)),
        "wk": n(ks[3], (HIDDEN, HIDDEN)), "bk": n(ks[10], (1, HIDDEN)),
        "wv": n(ks[4], (HIDDEN, HIDDEN)), "bv": n(ks[11], (1, HIDDEN)),
        "wo": n(ks[5], (HIDDEN, HIDDEN)), "bo": n(ks[12], (1, HIDDEN)),
        "g1": 1.0 + n(ks[13], (1, HIDDEN)), "be1": n(ks[14], (1, HIDDEN)),
        "w1": n(ks[6], (HIDDEN, FFN)), "bf1": n(ks[15], (1, FFN)),
        "w2": n(ks[7], (FFN, HIDDEN)), "bf2": n(ks[16], (1, HIDDEN)),
        "g2": 1.0 + n(ks[17], (1, HIDDEN)), "be2": n(ks[18], (1, HIDDEN)),
        "wu": n(ks[8], (HIDDEN, VOCAB)), "bu": n(ks[19], (1, VOCAB)),
    }


if __name__ == "__main__":
    key = jax.random.PRNGKey(0)
    pkey, xkey = jax.random.split(key)
    params = init_params(pkey)
    token_ids = jax.random.randint(xkey, (BATCH, SEQ), 0, VOCAB, dtype=jnp.int32)

    packed = pack_params(params)          # hoisted: packed once, reused per call
    out = bert_forward(token_ids, packed)
    out = jax.block_until_ready(out)

    ref = bert_reference(token_ids, params)
    assert out.shape == (BATCH, SEQ, VOCAB)
    # tolerance covers the bf16 MXU-input path (weights/activations cast to bf16
    # for matmuls, f32 accumulation & elementwise) vs. the all-f32 reference.
    assert jnp.allclose(out, ref, atol=2e-2, rtol=2e-2), "mismatch vs reference"
    print("KERNEL_OK")
</pallas_src>

<mosaic_0001>
module attributes {stable_mosaic.version = 11 : i64} {
  func.func @bert_kernel(%arg0: i32, %arg1: memref<16x1xi32, #tpu.memory_space<vmem>>, %arg2: memref<64x32xf32, #tpu.memory_space<vmem>>, %arg3: memref<16x32xf32, #tpu.memory_space<vmem>>, %arg4: memref<32x96xbf16, #tpu.memory_space<vmem>>, %arg5: memref<32x32xbf16, #tpu.memory_space<vmem>>, %arg6: memref<32x64xbf16, #tpu.memory_space<vmem>>, %arg7: memref<64x32xbf16, #tpu.memory_space<vmem>>, %arg8: memref<32x128xbf16, #tpu.memory_space<vmem>>, %arg9: memref<16x128xf32, #tpu.memory_space<vmem>>, %arg10: memref<16x128xf32, #tpu.memory_space<vmem>>) attributes {dimension_semantics = [#tpu.dimension_semantics<arbitrary>], iteration_bounds = array<i64: 1>, scalar_prefetch = 0 : i64, scratch_operands = 0 : i64, tpu.core_type = #tpu.core_type<tc>, window_params = [{pipeline_mode = #tpu.pipeline_mode<synchronous>, transform_indices = @transform_0, window_bounds = array<i64: 16, 1>}, {pipeline_mode = #tpu.pipeline_mode<synchronous>, transform_indices = @transform_1, window_bounds = array<i64: 64, 32>}, {pipeline_mode = #tpu.pipeline_mode<synchronous>, transform_indices = @transform_2, window_bounds = array<i64: 16, 32>}, {pipeline_mode = #tpu.pipeline_mode<synchronous>, transform_indices = @transform_3, window_bounds = array<i64: 32, 96>}, {pipeline_mode = #tpu.pipeline_mode<synchronous>, transform_indices = @transform_4, window_bounds = array<i64: 32, 32>}, {pipeline_mode = #tpu.pipeline_mode<synchronous>, transform_indices = @transform_5, window_bounds = array<i64: 32, 64>}, {pipeline_mode = #tpu.pipeline_mode<synchronous>, transform_indices = @transform_6, window_bounds = array<i64: 64, 32>}, {pipeline_mode = #tpu.pipeline_mode<synchronous>, transform_indices = @transform_7, window_bounds = array<i64: 32, 128>}, {pipeline_mode = #tpu.pipeline_mode<synchronous>, transform_indices = @transform_8, window_bounds = array<i64: 16, 128>}, {pipeline_mode = #tpu.pipeline_mode<synchronous>, transform_indices = @transform_9, window_bounds = array<i64: 16, 128>}]} {
    %c0 = arith.constant 0 : index
    %c0_0 = arith.constant 0 : index
    %0 = vector.load %arg9[%c0, %c0_0] : memref<16x128xf32, #tpu.memory_space<vmem>>, vector<1x96xf32>
    %c1 = arith.constant 1 : index
    %c0_1 = arith.constant 0 : index
    %1 = vector.load %arg9[%c1, %c0_1] : memref<16x128xf32, #tpu.memory_space<vmem>>, vector<1x32xf32>
    %c2 = arith.constant 2 : index
    %c0_2 = arith.constant 0 : index
    %2 = vector.load %arg9[%c2, %c0_2] : memref<16x128xf32, #tpu.memory_space<vmem>>, vector<1x32xf32>
    %c3 = arith.constant 3 : index
    %c0_3 = arith.constant 0 : index
    %3 = vector.load %arg9[%c3, %c0_3] : memref<16x128xf32, #tpu.memory_space<vmem>>, vector<1x32xf32>
    %c4 = arith.constant 4 : index
    %c0_4 = arith.constant 0 : index
    %4 = vector.load %arg9[%c4, %c0_4] : memref<16x128xf32, #tpu.memory_space<vmem>>, vector<1x64xf32>
    %c5 = arith.constant 5 : index
    %c0_5 = arith.constant 0 : index
    %5 = vector.load %arg9[%c5, %c0_5] : memref<16x128xf32, #tpu.memory_space<vmem>>, vector<1x32xf32>
    %c6 = arith.constant 6 : index
    %c0_6 = arith.constant 0 : index
    %6 = vector.load %arg9[%c6, %c0_6] : memref<16x128xf32, #tpu.memory_space<vmem>>, vector<1x32xf32>
    %c7 = arith.constant 7 : index
    %c0_7 = arith.constant 0 : index
    %7 = vector.load %arg9[%c7, %c0_7] : memref<16x128xf32, #tpu.memory_space<vmem>>, vector<1x32xf32>
    %c8 = arith.constant 8 : index
    %c0_8 = arith.constant 0 : index
    %8 = vector.load %arg9[%c8, %c0_8] : memref<16x128xf32, #tpu.memory_space<vmem>>, vector<1x128xf32>
    %c0_9 = arith.constant 0 : index
    %c0_10 = arith.constant 0 : index
    %9 = vector.load %arg1[%c0_9, %c0_10] : memref<16x1xi32, #tpu.memory_space<vmem>>, vector<16x1xi32>
    %10 = tpu.iota {dimensions = array<i32: 1>} : vector<16x64xi32>
    %11 = vector.broadcast %9 : vector<16x1xi32> to vector<16x64xi32>
    %12 = arith.cmpi eq, %11, %10 : vector<16x64xi32>
    %cst = arith.constant 1.000000e+00 : f32
    %cst_11 = arith.constant 0.000000e+00 : f32
    %13 = vector.broadcast %cst : f32 to vector<16x64xf32>
    %14 = vector.broadcast %cst_11 : f32 to vector<16x64xf32>
    %15 = arith.select %12, %13, %14 : vector<16x64xi1>, vector<16x64xf32>
    %c0_12 = arith.constant 0 : index
    %c0_13 = arith.constant 0 : index
    %16 = vector.load %arg2[%c0_12, %c0_13] : memref<64x32xf32, #tpu.memory_space<vmem>>, vector<64x32xf32>
    %cst_14 = arith.constant dense<0.000000e+00> : vector<16x32xf32>
    %17 = tpu.matmul %15, %16, %cst_14 {dimension_numbers = #tpu.dot_dimension_numbers<[1], [0], [0], [1], [0, 0, 1, 1], [], []>} : vector<16x64xf32>, vector<64x32xf32>, vector<16x32xf32> -> vector<16x32xf32>
    %c0_15 = arith.constant 0 : index
    %c0_16 = arith.constant 0 : index
    %18 = vector.load %arg3[%c0_15, %c0_16] : memref<16x32xf32, #tpu.memory_space<vmem>>, vector<16x32xf32>
    %19 = arith.addf %17, %18 : vector<16x32xf32>
    %20 = arith.truncf %19 : vector<16x32xf32> to vector<16x32xbf16>
    %c0_17 = arith.constant 0 : index
    %c0_18 = arith.constant 0 : index
    %21 = vector.load %arg4[%c0_17, %c0_18] : memref<32x96xbf16, #tpu.memory_space<vmem>>, vector<32x96xbf16>
    %cst_19 = arith.constant dense<0.000000e+00> : vector<16x96xf32>
    %22 = tpu.matmul %20, %21, %cst_19 {dimension_numbers = #tpu.dot_dimension_numbers<[1], [0], [0], [1], [0, 0, 1, 1], [], []>} : vector<16x32xbf16>, vector<32x96xbf16>, vector<16x96xf32> -> vector<16x96xf32>
    %23 = vector.broadcast %0 : vector<1x96xf32> to vector<16x96xf32>
    %24 = arith.addf %22, %23 : vector<16x96xf32>
    %25 = vector.extract_strided_slice %24 {offsets = [0, 0], sizes = [16, 8], strides = [1, 1]} : vector<16x96xf32> to vector<16x8xf32>
    %26 = vector.shape_cast %25 : vector<16x8xf32> to vector<2x8x8xf32>
    %27 = vector.extract_strided_slice %24 {offsets = [0, 32], sizes = [16, 8], strides = [1, 1]} : vector<16x96xf32> to vector<16x8xf32>
    %28 = vector.shape_cast %27 : vector<16x8xf32> to vector<2x8x8xf32>
    %29 = vector.extract_strided_slice %24 {offsets = [0, 64], sizes = [16, 8], strides = [1, 1]} : vector<16x96xf32> to vector<16x8xf32>
    %30 = vector.shape_cast %29 : vector<16x8xf32> to vector<2x8x8xf32>
    "tpu.trace_start"() <{level = 10 : i32, message = "bqe,bke->bqk"}> : () -> ()
    %cst_20 = arith.constant dense<0.000000e+00> : vector<2x8x8xf32>
    %31 = tpu.matmul %26, %28, %cst_20 {dimension_numbers = #tpu.dot_dimension_numbers<[2], [2], [1], [1], [0, 0, 0, 1, 1, 1], [0], [0]>} : vector<2x8x8xf32>, vector<2x8x8xf32>, vector<2x8x8xf32> -> vector<2x8x8xf32>
    "tpu.trace_stop"() : () -> ()
    %cst_21 = arith.constant 0.353553385 : f32
    %32 = vector.broadcast %cst_21 : f32 to vector<2x8x8xf32>
    %33 = arith.mulf %31, %32 : vector<2x8x8xf32>
    %cst_22 = arith.constant dense<0xFF800000> : vector<2x8xf32>
    %34 = vector.multi_reduction <maximumf>, %33, %cst_22 [2] : vector<2x8x8xf32> to vector<2x8xf32>
    %35 = vector.shape_cast %34 : vector<2x8xf32> to vector<2x8x1xf32>
    %36 = vector.broadcast %35 : vector<2x8x1xf32> to vector<2x8x8xf32>
    %37 = arith.subf %33, %36 : vector<2x8x8xf32>
    %38 = math.exp %37 : vector<2x8x8xf32>
    %cst_23 = arith.constant dense<0.000000e+00> : vector<2x8xf32>
    %39 = vector.multi_reduction <add>, %38, %cst_23 [2] : vector<2x8x8xf32> to vector<2x8xf32>
    %40 = vector.shape_cast %39 : vector<2x8xf32> to vector<2x8x1xf32>
    %41 = vector.broadcast %40 : vector<2x8x1xf32> to vector<2x8x8xf32>
    %42 = arith.divf %38, %41 : vector<2x8x8xf32>
    "tpu.trace_start"() <{level = 10 : i32, message = "bqk,bke->bqe"}> : () -> ()
    %cst_24 = arith.constant dense<0.000000e+00> : vector<2x8x8xf32>
    %43 = tpu.matmul %42, %30, %cst_24 {dimension_numbers = #tpu.dot_dimension_numbers<[2], [1], [1], [2], [0, 0, 0, 1, 1, 2], [0], [0]>} : vector<2x8x8xf32>, vector<2x8x8xf32>, vector<2x8x8xf32> -> vector<2x8x8xf32>
    "tpu.trace_stop"() : () -> ()
    %44 = vector.shape_cast %43 : vector<2x8x8xf32> to vector<16x8xf32>
    %45 = vector.extract_strided_slice %24 {offsets = [0, 8], sizes = [16, 8], strides = [1, 1]} : vector<16x96xf32> to vector<16x8xf32>
    %46 = vector.shape_cast %45 : vector<16x8xf32> to vector<2x8x8xf32>
    %47 = vector.extract_strided_slice %24 {offsets = [0, 40], sizes = [16, 8], strides = [1, 1]} : vector<16x96xf32> to vector<16x8xf32>
    %48 = vector.shape_cast %47 : vector<16x8xf32> to vector<2x8x8xf32>
    %49 = vector.extract_strided_slice %24 {offsets = [0, 72], sizes = [16, 8], strides = [1, 1]} : vector<16x96xf32> to vector<16x8xf32>
    %50 = vector.shape_cast %49 : vector<16x8xf32> to vector<2x8x8xf32>
    "tpu.trace_start"() <{level = 10 : i32, message = "bqe,bke->bqk"}> : () -> ()
    %cst_25 = arith.constant dense<0.000000e+00> : vector<2x8x8xf32>
    %51 = tpu.matmul %46, %48, %cst_25 {dimension_numbers = #tpu.dot_dimension_numbers<[2], [2], [1], [1], [0, 0, 0, 1, 1, 1], [0], [0]>} : vector<2x8x8xf32>, vector<2x8x8xf32>, vector<2x8x8xf32> -> vector<2x8x8xf32>
    "tpu.trace_stop"() : () -> ()
    %cst_26 = arith.constant 0.353553385 : f32
    %52 = vector.broadcast %cst_26 : f32 to vector<2x8x8xf32>
    %53 = arith.mulf %51, %52 : vector<2x8x8xf32>
    %cst_27 = arith.constant dense<0xFF800000> : vector<2x8xf32>
    %54 = vector.multi_reduction <maximumf>, %53, %cst_27 [2] : vector<2x8x8xf32> to vector<2x8xf32>
    %55 = vector.shape_cast %54 : vector<2x8xf32> to vector<2x8x1xf32>
    %56 = vector.broadcast %55 : vector<2x8x1xf32> to vector<2x8x8xf32>
    %57 = arith.subf %53, %56 : vector<2x8x8xf32>
    %58 = math.exp %57 : vector<2x8x8xf32>
    %cst_28 = arith.constant dense<0.000000e+00> : vector<2x8xf32>
    %59 = vector.multi_reduction <add>, %58, %cst_28 [2] : vector<2x8x8xf32> to vector<2x8xf32>
    %60 = vector.shape_cast %59 : vector<2x8xf32> to vector<2x8x1xf32>
    %61 = vector.broadcast %60 : vector<2x8x1xf32> to vector<2x8x8xf32>
    %62 = arith.divf %58, %61 : vector<2x8x8xf32>
    "tpu.trace_start"() <{level = 10 : i32, message = "bqk,bke->bqe"}> : () -> ()
    %cst_29 = arith.constant dense<0.000000e+00> : vector<2x8x8xf32>
    %63 = tpu.matmul %62, %50, %cst_29 {dimension_numbers = #tpu.dot_dimension_numbers<[2], [1], [1], [2], [0, 0, 0, 1, 1, 2], [0], [0]>} : vector<2x8x8xf32>, vector<2x8x8xf32>, vector<2x8x8xf32> -> vector<2x8x8xf32>
    "tpu.trace_stop"() : () -> ()
    %64 = vector.shape_cast %63 : vector<2x8x8xf32> to vector<16x8xf32>
    %65 = vector.extract_strided_slice %24 {offsets = [0, 16], sizes = [16, 8], strides = [1, 1]} : vector<16x96xf32> to vector<16x8xf32>
    %66 = vector.shape_cast %65 : vector<16x8xf32> to vector<2x8x8xf32>
    %67 = vector.extract_strided_slice %24 {offsets = [0, 48], sizes = [16, 8], strides = [1, 1]} : vector<16x96xf32> to vector<16x8xf32>
    %68 = vector.shape_cast %67 : vector<16x8xf32> to vector<2x8x8xf32>
    %69 = vector.extract_strided_slice %24 {offsets = [0, 80], sizes = [16, 8], strides = [1, 1]} : vector<16x96xf32> to vector<16x8xf32>
    %70 = vector.shape_cast %69 : vector<16x8xf32> to vector<2x8x8xf32>
    "tpu.trace_start"() <{level = 10 : i32, message = "bqe,bke->bqk"}> : () -> ()
    %cst_30 = arith.constant dense<0.000000e+00> : vector<2x8x8xf32>
    %71 = tpu.matmul %66, %68, %cst_30 {dimension_numbers = #tpu.dot_dimension_numbers<[2], [2], [1], [1], [0, 0, 0, 1, 1, 1], [0], [0]>} : vector<2x8x8xf32>, vector<2x8x8xf32>, vector<2x8x8xf32> -> vector<2x8x8xf32>
    "tpu.trace_stop"() : () -> ()
    %cst_31 = arith.constant 0.353553385 : f32
    %72 = vector.broadcast %cst_31 : f32 to vector<2x8x8xf32>
    %73 = arith.mulf %71, %72 : vector<2x8x8xf32>
    %cst_32 = arith.constant dense<0xFF800000> : vector<2x8xf32>
    %74 = vector.multi_reduction <maximumf>, %73, %cst_32 [2] : vector<2x8x8xf32> to vector<2x8xf32>
    %75 = vector.shape_cast %74 : vector<2x8xf32> to vector<2x8x1xf32>
    %76 = vector.broadcast %75 : vector<2x8x1xf32> to vector<2x8x8xf32>
    %77 = arith.subf %73, %76 : vector<2x8x8xf32>
    %78 = math.exp %77 : vector<2x8x8xf32>
    %cst_33 = arith.constant dense<0.000000e+00> : vector<2x8xf32>
    %79 = vector.multi_reduction <add>, %78, %cst_33 [2] : vector<2x8x8xf32> to vector<2x8xf32>
    %80 = vector.shape_cast %79 : vector<2x8xf32> to vector<2x8x1xf32>
    %81 = vector.broadcast %80 : vector<2x8x1xf32> to vector<2x8x8xf32>
    %82 = arith.divf %78, %81 : vector<2x8x8xf32>
    "tpu.trace_start"() <{level = 10 : i32, message = "bqk,bke->bqe"}> : () -> ()
    %cst_34 = arith.constant dense<0.000000e+00> : vector<2x8x8xf32>
    %83 = tpu.matmul %82, %70, %cst_34 {dimension_numbers = #tpu.dot_dimension_numbers<[2], [1], [1], [2], [0, 0, 0, 1, 1, 2], [0], [0]>} : vector<2x8x8xf32>, vector<2x8x8xf32>, vector<2x8x8xf32> -> vector<2x8x8xf32>
    "tpu.trace_stop"() : () -> ()
    %84 = vector.shape_cast %83 : vector<2x8x8xf32> to vector<16x8xf32>
    %85 = vector.extract_strided_slice %24 {offsets = [0, 24], sizes = [16, 8], strides = [1, 1]} : vector<16x96xf32> to vector<16x8xf32>
    %86 = vector.shape_cast %85 : vector<16x8xf32> to vector<2x8x8xf32>
    %87 = vector.extract_strided_slice %24 {offsets = [0, 56], sizes = [16, 8], strides = [1, 1]} : vector<16x96xf32> to vector<16x8xf32>
    %88 = vector.shape_cast %87 : vector<16x8xf32> to vector<2x8x8xf32>
    %89 = vector.extract_strided_slice %24 {offsets = [0, 88], sizes = [16, 8], strides = [1, 1]} : vector<16x96xf32> to vector<16x8xf32>
    %90 = vector.shape_cast %89 : vector<16x8xf32> to vector<2x8x8xf32>
    "tpu.trace_start"() <{level = 10 : i32, message = "bqe,bke->bqk"}> : () -> ()
    %cst_35 = arith.constant dense<0.000000e+00> : vector<2x8x8xf32>
    %91 = tpu.matmul %86, %88, %cst_35 {dimension_numbers = #tpu.dot_dimension_numbers<[2], [2], [1], [1], [0, 0, 0, 1, 1, 1], [0], [0]>} : vector<2x8x8xf32>, vector<2x8x8xf32>, vector<2x8x8xf32> -> vector<2x8x8xf32>
    "tpu.trace_stop"() : () -> ()
    %cst_36 = arith.constant 0.353553385 : f32
    %92 = vector.broadcast %cst_36 : f32 to vector<2x8x8xf32>
    %93 = arith.mulf %91, %92 : vector<2x8x8xf32>
    %cst_37 = arith.constant dense<0xFF800000> : vector<2x8xf32>
    %94 = vector.multi_reduction <maximumf>, %93, %cst_37 [2] : vector<2x8x8xf32> to vector<2x8xf32>
    %95 = vector.shape_cast %94 : vector<2x8xf32> to vector<2x8x1xf32>
    %96 = vector.broadcast %95 : vector<2x8x1xf32> to vector<2x8x8xf32>
    %97 = arith.subf %93, %96 : vector<2x8x8xf32>
    %98 = math.exp %97 : vector<2x8x8xf32>
    %cst_38 = arith.constant dense<0.000000e+00> : vector<2x8xf32>
    %99 = vector.multi_reduction <add>, %98, %cst_38 [2] : vector<2x8x8xf32> to vector<2x8xf32>
    %100 = vector.shape_cast %99 : vector<2x8xf32> to vector<2x8x1xf32>
    %101 = vector.broadcast %100 : vector<2x8x1xf32> to vector<2x8x8xf32>
    %102 = arith.divf %98, %101 : vector<2x8x8xf32>
    "tpu.trace_start"() <{level = 10 : i32, message = "bqk,bke->bqe"}> : () -> ()
    %cst_39 = arith.constant dense<0.000000e+00> : vector<2x8x8xf32>
    %103 = tpu.matmul %102, %90, %cst_39 {dimension_numbers = #tpu.dot_dimension_numbers<[2], [1], [1], [2], [0, 0, 0, 1, 1, 2], [0], [0]>} : vector<2x8x8xf32>, vector<2x8x8xf32>, vector<2x8x8xf32> -> vector<2x8x8xf32>
    "tpu.trace_stop"() : () -> ()
    %104 = vector.shape_cast %103 : vector<2x8x8xf32> to vector<16x8xf32>
    %105 = tpu.concatenate %44, %64, %84, %104 in 1 : vector<16x8xf32>, vector<16x8xf32>, vector<16x8xf32>, vector<16x8xf32> -> vector<16x32xf32>
    %106 = arith.truncf %105 : vector<16x32xf32> to vector<16x32xbf16>
    %c0_40 = arith.constant 0 : index
    %c0_41 = arith.constant 0 : index
    %107 = vector.load %arg5[%c0_40, %c0_41] : memref<32x32xbf16, #tpu.memory_space<vmem>>, vector<32x32xbf16>
    %cst_42 = arith.constant dense<0.000000e+00> : vector<16x32xf32>
    %108 = tpu.matmul %106, %107, %cst_42 {dimension_numbers = #tpu.dot_dimension_numbers<[1], [0], [0], [1], [0, 0, 1, 1], [], []>} : vector<16x32xbf16>, vector<32x32xbf16>, vector<16x32xf32> -> vector<16x32xf32>
    %109 = vector.broadcast %1 : vector<1x32xf32> to vector<16x32xf32>
    %110 = arith.addf %108, %109 : vector<16x32xf32>
    %111 = arith.addf %19, %110 : vector<16x32xf32>
    %cst_43 = arith.constant dense<0.000000e+00> : vector<16xf32>
    %112 = vector.multi_reduction <add>, %111, %cst_43 [1] : vector<16x32xf32> to vector<16xf32>
    %113 = vector.shape_cast %112 : vector<16xf32> to vector<16x1xf32>
    %cst_44 = arith.constant 3.200000e+01 : f32
    %114 = vector.broadcast %cst_44 : f32 to vector<16x1xf32>
    %115 = arith.divf %113, %114 : vector<16x1xf32>
    %116 = vector.broadcast %115 : vector<16x1xf32> to vector<16x32xf32>
    %117 = arith.subf %111, %116 : vector<16x32xf32>
    %118 = arith.mulf %117, %117 : vector<16x32xf32>
    %cst_45 = arith.constant dense<0.000000e+00> : vector<16xf32>
    %119 = vector.multi_reduction <add>, %118, %cst_45 [1] : vector<16x32xf32> to vector<16xf32>
    %120 = vector.shape_cast %119 : vector<16xf32> to vector<16x1xf32>
    %cst_46 = arith.constant 3.200000e+01 : f32
    %121 = vector.broadcast %cst_46 : f32 to vector<16x1xf32>
    %122 = arith.divf %120, %121 : vector<16x1xf32>
    %123 = vector.broadcast %115 : vector<16x1xf32> to vector<16x32xf32>
    %124 = arith.subf %111, %123 : vector<16x32xf32>
    %cst_47 = arith.constant 9.99999974E-6 : f32
    %125 = vector.broadcast %cst_47 : f32 to vector<16x1xf32>
    %126 = arith.addf %122, %125 : vector<16x1xf32>
    %127 = math.rsqrt %126 : vector<16x1xf32>
    %128 = vector.broadcast %127 : vector<16x1xf32> to vector<16x32xf32>
    %129 = arith.mulf %124, %128 : vector<16x32xf32>
    %130 = vector.broadcast %2 : vector<1x32xf32> to vector<16x32xf32>
    %131 = arith.mulf %129, %130 : vector<16x32xf32>
    %132 = vector.broadcast %3 : vector<1x32xf32> to vector<16x32xf32>
    %133 = arith.addf %131, %132 : vector<16x32xf32>
    %134 = arith.truncf %133 : vector<16x32xf32> to vector<16x32xbf16>
    %c0_48 = arith.constant 0 : index
    %c0_49 = arith.constant 0 : index
    %135 = vector.load %arg6[%c0_48, %c0_49] : memref<32x64xbf16, #tpu.memory_space<vmem>>, vector<32x64xbf16>
    %cst_50 = arith.constant dense<0.000000e+00> : vector<16x64xf32>
    %136 = tpu.matmul %134, %135, %cst_50 {dimension_numbers = #tpu.dot_dimension_numbers<[1], [0], [0], [1], [0, 0, 1, 1], [], []>} : vector<16x32xbf16>, vector<32x64xbf16>, vector<16x64xf32> -> vector<16x64xf32>
    %137 = vector.broadcast %4 : vector<1x64xf32> to vector<16x64xf32>
    %138 = arith.addf %136, %137 : vector<16x64xf32>
    %139 = arith.mulf %138, %138 : vector<16x64xf32>
    %140 = arith.mulf %138, %139 : vector<16x64xf32>
    %cst_51 = arith.constant 4.471500e-02 : f32
    %141 = vector.broadcast %cst_51 : f32 to vector<16x64xf32>
    %142 = arith.mulf %141, %140 : vector<16x64xf32>
    %143 = arith.addf %138, %142 : vector<16x64xf32>
    %cst_52 = arith.constant 0.797884583 : f32
    %144 = vector.broadcast %cst_52 : f32 to vector<16x64xf32>
    %145 = arith.mulf %144, %143 : vector<16x64xf32>
    %146 = math.tanh %145 : vector<16x64xf32>
    %cst_53 = arith.constant 1.000000e+00 : f32
    %147 = vector.broadcast %cst_53 : f32 to vector<16x64xf32>
    %148 = arith.addf %147, %146 : vector<16x64xf32>
    %cst_54 = arith.constant 5.000000e-01 : f32
    %149 = vector.broadcast %cst_54 : f32 to vector<16x64xf32>
    %150 = arith.mulf %149, %148 : vector<16x64xf32>
    %151 = arith.mulf %138, %150 : vector<16x64xf32>
    %152 = arith.truncf %151 : vector<16x64xf32> to vector<16x64xbf16>
    %c0_55 = arith.constant 0 : index
    %c0_56 = arith.constant 0 : index
    %153 = vector.load %arg7[%c0_55, %c0_56] : memref<64x32xbf16, #tpu.memory_space<vmem>>, vector<64x32xbf16>
    %cst_57 = arith.constant dense<0.000000e+00> : vector<16x32xf32>
    %154 = tpu.matmul %152, %153, %cst_57 {dimension_numbers = #tpu.dot_dimension_numbers<[1], [0], [0], [1], [0, 0, 1, 1], [], []>} : vector<16x64xbf16>, vector<64x32xbf16>, vector<16x32xf32> -> vector<16x32xf32>
    %155 = vector.broadcast %5 : vector<1x32xf32> to vector<16x32xf32>
    %156 = arith.addf %154, %155 : vector<16x32xf32>
    %157 = arith.addf %133, %156 : vector<16x32xf32>
    %cst_58 = arith.constant dense<0.000000e+00> : vector<16xf32>
    %158 = vector.multi_reduction <add>, %157, %cst_58 [1] : vector<16x32xf32> to vector<16xf32>
    %159 = vector.shape_cast %158 : vector<16xf32> to vector<16x1xf32>
    %cst_59 = arith.constant 3.200000e+01 : f32
    %160 = vector.broadcast %cst_59 : f32 to vector<16x1xf32>
    %161 = arith.divf %159, %160 : vector<16x1xf32>
    %162 = vector.broadcast %161 : vector<16x1xf32> to vector<16x32xf32>
    %163 = arith.subf %157, %162 : vector<16x32xf32>
    %164 = arith.mulf %163, %163 : vector<16x32xf32>
    %cst_60 = arith.constant dense<0.000000e+00> : vector<16xf32>
    %165 = vector.multi_reduction <add>, %164, %cst_60 [1] : vector<16x32xf32> to vector<16xf32>
    %166 = vector.shape_cast %165 : vector<16xf32> to vector<16x1xf32>
    %cst_61 = arith.constant 3.200000e+01 : f32
    %167 = vector.broadcast %cst_61 : f32 to vector<16x1xf32>
    %168 = arith.divf %166, %167 : vector<16x1xf32>
    %169 = vector.broadcast %161 : vector<16x1xf32> to vector<16x32xf32>
    %170 = arith.subf %157, %169 : vector<16x32xf32>
    %cst_62 = arith.constant 9.99999974E-6 : f32
    %171 = vector.broadcast %cst_62 : f32 to vector<16x1xf32>
    %172 = arith.addf %168, %171 : vector<16x1xf32>
    %173 = math.rsqrt %172 : vector<16x1xf32>
    %174 = vector.broadcast %173 : vector<16x1xf32> to vector<16x32xf32>
    %175 = arith.mulf %170, %174 : vector<16x32xf32>
    %176 = vector.broadcast %6 : vector<1x32xf32> to vector<16x32xf32>
    %177 = arith.mulf %175, %176 : vector<16x32xf32>
    %178 = vector.broadcast %7 : vector<1x32xf32> to vector<16x32xf32>
    %179 = arith.addf %177, %178 : vector<16x32xf32>
    %180 = arith.truncf %179 : vector<16x32xf32> to vector<16x32xbf16>
    %c0_63 = arith.constant 0 : index
    %c0_64 = arith.constant 0 : index
    %181 = vector.load %arg8[%c0_63, %c0_64] : memref<32x128xbf16, #tpu.memory_space<vmem>>, vector<32x128xbf16>
    %cst_65 = arith.constant dense<0.000000e+00> : vector<16x128xf32>
    %182 = tpu.matmul %180, %181, %cst_65 {dimension_numbers = #tpu.dot_dimension_numbers<[1], [0], [0], [1], [0, 0, 1, 1], [], []>} : vector<16x32xbf16>, vector<32x128xbf16>, vector<16x128xf32> -> vector<16x128xf32>
    %183 = vector.broadcast %8 : vector<1x128xf32> to vector<16x128xf32>
    %184 = arith.addf %182, %183 : vector<16x128xf32>
    %c0_66 = arith.constant 0 : index
    %c0_67 = arith.constant 0 : index
    %185 = vector.load %arg10[%c0_66, %c0_67] : memref<16x128xf32, #tpu.memory_space<vmem>>, vector<16x128xf32>
    tpu.vector_store %arg10[%c0_66, %c0_67], %184 {strides = array<i32>} : memref<16x128xf32, #tpu.memory_space<vmem>>, vector<16x128xf32>,
    return
  }
  func.func @transform_0(%arg0: i32) -> (i32, i32) {
    %c0_i32 = arith.constant 0 : i32
    %c0_i32_0 = arith.constant 0 : i32
    %c0_i32_1 = arith.constant 0 : i32
    return %c0_i32, %c0_i32_0 : i32, i32
  }
  func.func @transform_1(%arg0: i32) -> (i32, i32) {
    %c0_i32 = arith.constant 0 : i32
    %c0_i32_0 = arith.constant 0 : i32
    %c0_i32_1 = arith.constant 0 : i32
    return %c0_i32, %c0_i32_0 : i32, i32
  }
  func.func @transform_2(%arg0: i32) -> (i32, i32) {
    %c0_i32 = arith.constant 0 : i32
    %c0_i32_0 = arith.constant 0 : i32
    %c0_i32_1 = arith.constant 0 : i32
    return %c0_i32, %c0_i32_0 : i32, i32
  }
  func.func @transform_3(%arg0: i32) -> (i32, i32) {
    %c0_i32 = arith.constant 0 : i32
    %c0_i32_0 = arith.constant 0 : i32
    %c0_i32_1 = arith.constant 0 : i32
    return %c0_i32, %c0_i32_0 : i32, i32
  }
  func.func @transform_4(%arg0: i32) -> (i32, i32) {
    %c0_i32 = arith.constant 0 : i32
    %c0_i32_0 = arith.constant 0 : i32
    %c0_i32_1 = arith.constant 0 : i32
    return %c0_i32, %c0_i32_0 : i32, i32
  }
  func.func @transform_5(%arg0: i32) -> (i32, i32) {
    %c0_i32 = arith.constant 0 : i32
    %c0_i32_0 = arith.constant 0 : i32
    %c0_i32_1 = arith.constant 0 : i32
    return %c0_i32, %c0_i32_0 : i32, i32
  }
  func.func @transform_6(%arg0: i32) -> (i32, i32) {
    %c0_i32 = arith.constant 0 : i32
    %c0_i32_0 = arith.constant 0 : i32
    %c0_i32_1 = arith.constant 0 : i32
    return %c0_i32, %c0_i32_0 : i32, i32
  }
  func.func @transform_7(%arg0: i32) -> (i32, i32) {
    %c0_i32 = arith.constant 0 : i32
    %c0_i32_0 = arith.constant 0 : i32
    %c0_i32_1 = arith.constant 0 : i32
    return %c0_i32, %c0_i32_0 : i32, i32
  }
  func.func @transform_8(%arg0: i32) -> (i32, i32) {
    %c0_i32 = arith.constant 0 : i32
    %c0_i32_0 = arith.constant 0 : i32
    %c0_i32_1 = arith.constant 0 : i32
    return %c0_i32, %c0_i32_0 : i32, i32
  }
  func.func @transform_9(%arg0: i32) -> (i32, i32) {
    %c0_i32 = arith.constant 0 : i32
    %c0_i32_0 = arith.constant 0 : i32
    %c0_i32_1 = arith.constant 0 : i32
    return %c0_i32, %c0_i32_0 : i32, i32
  }
}

</mosaic_0001>

<llo_original>
// kernel: _bert_forward.1
$region0: #{_bert_forward.1}
  #allocation0 [shape = 'u32[]', space=smem, size = 0x4, offset = 0x4, fixed_abs, tag = 'smem constant byte address 0x4 - core index']
  #allocation1 [shape = 'u32[144,128]{1,0:T(1,128)}', space=vmem, size = 0x12000, scoped, tag = 'internal scratch']
  %s0 = inlined_call_operand.vmem [shape: s32[16,1], index: 0, kind: input, shape index: {}]
  %s1 = inlined_call_operand.vmem [shape: f32[64,32], index: 1, kind: input, shape index: {}]
  %s2 = inlined_call_operand.vmem [shape: f32[16,32], index: 2, kind: input, shape index: {}]
  %s3 = inlined_call_operand.vmem [shape: bf16[32,96], index: 3, kind: input, shape index: {}]
  %s4 = inlined_call_operand.vmem [shape: bf16[32,32], index: 4, kind: input, shape index: {}]
  %s5 = inlined_call_operand.vmem [shape: bf16[32,64], index: 5, kind: input, shape index: {}]
  %s6 = inlined_call_operand.vmem [shape: bf16[64,32], index: 6, kind: input, shape index: {}]
  %s7 = inlined_call_operand.vmem [shape: bf16[32,128], index: 7, kind: input, shape index: {}]
  %s8 = inlined_call_operand.vmem [shape: f32[16,128], index: 8, kind: input, shape index: {}]
  %s9 = inlined_call_operand.hbm [shape: f32[16,128], index: 9, kind: output, shape index: {}]
  %s10 = sld [smem:[#allocation0]]
  $region46: #{_bert_forward.1} parent=0
    _
  %s12 = ssub.s32 1, %s10
  %s13 = scalar_select 0, %s12, %s10
  $region1: #{_bert_forward.1} parent=0
    #allocation2 [shape = 'u8[8192]{0}', space=vmem, size = 0x2000, scoped, tag = 'output window, operand 0, single buffered']
    #allocation3 [shape = 's32[1]{0}', space=sflag, size = 0x4, scoped, tag = 'scoped memory for _bert_forward.1']
    %14 = vsyncpa [#allocation3], 0
    // Predicated region
    $region2: #{_bert_forward.1} parent=1 // pred_check
      _
    $region3: #{_bert_forward.1} parent=1 // pred_check_branch
      %16 = sbr.rel (0) target = $region5
    $region4: #{_bert_forward.1} parent=1 // pred_region
      _
    $region5: #{_bert_forward.1} parent=1 // pred_fallthru
      _
    // Predicated region
    $region6: #{_bert_forward.1} parent=1 // pred_check
      _
    $region7: #{_bert_forward.1} parent=1 // pred_check_branch
      %18 = sbr.rel (0) target = $region9
    $region8: #{_bert_forward.1} parent=1 // pred_region
      _
    $region9: #{_bert_forward.1} parent=1 // pred_fallthru
      _
    // Predicated region
    $region10: #{_bert_forward.1} parent=1 // pred_check
      _
    $region11: #{_bert_forward.1} parent=1 // pred_check_branch
      %20 = sbr.rel (0) target = $region13
    $region12: #{_bert_forward.1} parent=1 // pred_region
      _
    $region13: #{_bert_forward.1} parent=1 // pred_fallthru
      _
    // Predicated region
    $region14: #{_bert_forward.1} parent=1 // pred_check
      _
    $region15: #{_bert_forward.1} parent=1 // pred_check_branch
      %22 = sbr.rel (0) target = $region17
    $region16: #{_bert_forward.1} parent=1 // pred_region
      _
    $region17: #{_bert_forward.1} parent=1 // pred_fallthru
      _
    // Predicated region
    $region18: #{_bert_forward.1} parent=1 // pred_check
      _
    $region19: #{_bert_forward.1} parent=1 // pred_check_branch
      %24 = sbr.rel (0) target = $region21
    $region20: #{_bert_forward.1} parent=1 // pred_region
      _
    $region21: #{_bert_forward.1} parent=1 // pred_fallthru
      _
    // Predicated region
    $region22: #{_bert_forward.1} parent=1 // pred_check
      _
    $region23: #{_bert_forward.1} parent=1 // pred_check_branch
      %26 = sbr.rel (0) target = $region25
    $region24: #{_bert_forward.1} parent=1 // pred_region
      _
    $region25: #{_bert_forward.1} parent=1 // pred_fallthru
      _
    // Predicated region
    $region26: #{_bert_forward.1} parent=1 // pred_check
      _
    $region27: #{_bert_forward.1} parent=1 // pred_check_branch
      %28 = sbr.rel (0) target = $region29
    $region28: #{_bert_forward.1} parent=1 // pred_region
      _
    $region29: #{_bert_forward.1} parent=1 // pred_fallthru
      _
    // Predicated region
    $region30: #{_bert_forward.1} parent=1 // pred_check
      _
    $region31: #{_bert_forward.1} parent=1 // pred_check_branch
      %30 = sbr.rel (0) target = $region33
    $region32: #{_bert_forward.1} parent=1 // pred_region
      _
    $region33: #{_bert_forward.1} parent=1 // pred_fallthru
      _
    // Predicated region
    $region34: #{_bert_forward.1} parent=1 // pred_check
      _
    $region35: #{_bert_forward.1} parent=1 // pred_check_branch
      %32 = sbr.rel (0) target = $region37
    $region36: #{_bert_forward.1} parent=1 // pred_region
      _
    $region37: #{_bert_forward.1} parent=1 // pred_fallthru
      _
    %v34 = vld [vmem:[%s8] sm:$0x1]
    %v35 = vld [vmem:[%s8 + $0x1] sm:$0x1]
    %v36 = vld [vmem:[%s8 + $0x2] sm:$0x1]
    %v37 = vld [vmem:[%s8 + $0x3] sm:$0x1]
    %v38 = vld [vmem:[%s8 + $0x4] sm:$0x1]
    %v39 = vld [vmem:[%s8 + $0x5] sm:$0x1]
    %v40 = vld [vmem:[%s8 + $0x6] sm:$0x1]
    %v41 = vld [vmem:[%s8 + $0x7] sm:$0x1]
    %v42 = vld [vmem:[%s8 + $0x8] sm:$0x1]
    %v43 = vld [vmem:[%s0] sm:$0xff]
    %v44 = vld [vmem:[%s0 + $0x8] sm:$0xff]
    %v45 = vlaneseq
    %v46 = vand.u32 %v45, 127
    %47 = vset.pattern.permute.xlu0 0
    %48 = vperm.xlu0 %47, %v43
    %v49 = vpop.permute.xlu0 %48
    %50 = vset.pattern.permute.xlu0 0
    %51 = vperm.xlu0 %50, %v44
    %v52 = vpop.permute.xlu0 %51
    %vm53 = vcmp.eq.s32.totalorder %v49, %v46
    %vm54 = vcmp.eq.s32.totalorder %v52, %v46
    %v55 = vsel %vm53, 1.0, 0.0
    %v56 = vsel %vm54, 1.0, 0.0
    %v57 = vld [vmem:[%s1] sm:$0xff]
    %v58 = vld [vmem:[%s1 + $0x8] sm:$0xff]
    %v59 = vld [vmem:[%s1 + $0x10] sm:$0xff]
    %v60 = vld [vmem:[%s1 + $0x18] sm:$0xff]
    %v61 = vld [vmem:[%s1 + $0x20] sm:$0xff]
    %v62 = vld [vmem:[%s1 + $0x28] sm:$0xff]
    %v63 = vld [vmem:[%s1 + $0x30] sm:$0xff]
    %v64 = vld [vmem:[%s1 + $0x38] sm:$0xff]
    %v65 = vld [vmem:[%s2] sm:$0xff]
    %v66 = vld [vmem:[%s2 + $0x8] sm:$0xff]
    %vm67 = vcmask 523264
    %v69 = vsel %vm67, %v55, 0
    %v72 = vsel %vm67, %v56, 0
    %74 = vmatprep.subr.mxu0 0.0
    %75 = vmatpush1.msra.mxu0 0.0
    %76 = vmatprep.subr.mxu0 0.0
    %77 = vmatpush1.msra.mxu0 0.0
    %78 = vmatprep.subr.mxu0 0.0
    %79 = vmatpush1.msra.mxu0 0.0
    %80 = vmatprep.subr.mxu0 0.0
    %81 = vmatpush1.msra.mxu0 0.0
    %82 = vmatprep.subr.mxu0 0.0
    %83 = vmatpush1.msra.mxu0 0.0
    %84 = vmatprep.subr.mxu0 0.0
    %85 = vmatpush1.msra.mxu0 0.0
    %86 = vmatprep.subr.mxu0 0.0
    %87 = vmatpush1.msra.mxu0 0.0
    %88 = vmatprep.subr.mxu0 0.0
    %89 = vmatpush1.msra.mxu0 0.0
    %90 = vmatprep.subr.mxu0 0.0
    %91 = vmatpush1.msra.mxu0 %v64
    %92 = vmatprep.subr.mxu0 0.0
    %93 = vmatpush1.msra.mxu0 %v63
    %94 = vmatprep.subr.mxu0 0.0
    %95 = vmatpush1.msra.mxu0 %v62
    %96 = vmatprep.subr.mxu0 0.0
    %97 = vmatpush1.msra.mxu0 %v61
    %98 = vmatprep.subr.mxu0 0.0
    %99 = vmatpush1.msra.mxu0 %v60
    %100 = vmatprep.subr.mxu0 0.0
    %101 = vmatpush1.msra.mxu0 %v59
    %102 = vmatprep.subr.mxu0 0.0
    %103 = vmatpush1.msra.mxu0 %v58
    %104 = vmatprep.subr.mxu0 0.0
    %105 = vmatpush1.msra.mxu0 %v57
    %106 = vmatprep.subr.mxu0 0.0
    %107 = vmatpush2.msra.mxu0 0.0
    %108 = vmatprep.subr.mxu0 0.0
    %109 = vmatpush2.msra.mxu0 0.0
    %110 = vmatprep.subr.mxu0 0.0
    %111 = vmatpush2.msra.mxu0 0.0
    %112 = vmatprep.subr.mxu0 0.0
    %113 = vmatpush2.msra.mxu0 0.0
    %114 = vmatprep.subr.mxu0 0.0
    %115 = vmatpush2.msra.mxu0 0.0
    %116 = vmatprep.subr.mxu0 0.0
    %117 = vmatpush2.msra.mxu0 0.0
    %118 = vmatprep.subr.mxu0 0.0
    %119 = vmatpush2.msra.mxu0 0.0
    %120 = vmatprep.subr.mxu0 0.0
    %121 = vmatpush2.msra.mxu0 0.0
    %122 = vmatprep.subr.mxu0 0.0
    %123 = vmatpush2.msra.mxu0 0.0
    %124 = vmatprep.subr.mxu0 0.0
    %125 = vmatpush2.msra.mxu0 0.0
    %126 = vmatprep.subr.mxu0 0.0
    %127 = vmatpush2.msra.mxu0 0.0
    %128 = vmatprep.subr.mxu0 0.0
    %129 = vmatpush2.msra.mxu0 0.0
    %130 = vmatprep.subr.mxu0 0.0
    %131 = vmatpush2.msra.mxu0 0.0
    %132 = vmatprep.subr.mxu0 0.0
    %133 = vmatpush2.msra.mxu0 0.0
    %134 = vmatprep.subr.mxu0 0.0
    %135 = vmatpush2.msra.mxu0 0.0
    %136 = vmatprep.subr.mxu0 0.0
    %137 = vmatpush2.msra.mxu0 0.0
    %138 = vmatprep.mubr.f32.mxu0 0.0
    %139 = vmatmul.mubr.f32.gmra.mxu0 %v69
    %v140 = vpop.f32.mrf.mxu0
    %v141 = vadd.f32 %v65, %v140
    %v142 = vpop.f32.mrf.mxu0
    %143 = vmatprep.mubr.f32.mxu0 0.0
    %144 = vmatmul.mubr.f32.gmra.mxu0 %v72
    %v145 = vpop.f32.mrf.mxu0
    %v146 = vadd.f32 %v66, %v145
    %v147 = vpop.f32.mrf.mxu0
    %148 = vdwg.mxu0
    %v149 = vpack.c.bf16 %v146, %v141
    %v150 = vld [vmem:[%s3] sm:$0xf]
    %v151 = vld [vmem:[%s3 + $0x4] sm:$0xf]
    %v152 = vld [vmem:[%s3 + $0x8] sm:$0xf]
    %v153 = vld [vmem:[%s3 + $0xc] sm:$0xf]
    %v154 = vlaneseq
    %v155 = vshrl.u32 %v154, 7
    %v156 = vsub.s32 0, %v155
    %v157 = vrot.slane %v34, %v156
    %v162 = vunpack.c.l.b16 %v150
    %v163 = vunpack.c.l.b16 %v151
    %v164 = vunpack.c.l.b16 %v152
    %v165 = vunpack.c.l.b16 %v153
    %v166 = vpack.c.b16 %v163, %v162
    %v167 = vpack.c.b16 %v165, %v164
    %vm170 = vcmask 261120
    %v172 = vsel %vm170, %v149, 0
    %174 = vmatprep.subr.bf16.mxu0 0
    %175 = vmatpush1.bf16.msra.mxu0 0
    %176 = vmatprep.subr.bf16.mxu0 0
    %177 = vmatpush1.bf16.msra.mxu0 0
    %178 = vmatprep.subr.bf16.mxu0 0
    %179 = vmatpush1.bf16.msra.mxu0 0
    %180 = vmatprep.subr.bf16.mxu0 0
    %181 = vmatpush1.bf16.msra.mxu0 0
    %182 = vmatprep.subr.bf16.mxu0 0
    %183 = vmatpush1.bf16.msra.mxu0 0
    %184 = vmatprep.subr.bf16.mxu0 0
    %185 = vmatpush1.bf16.msra.mxu0 0
    %186 = vmatprep.subr.bf16.mxu0 0
    %187 = vmatpush1.bf16.msra.mxu0 %v167
    %188 = vmatprep.subr.bf16.mxu0 0
    %189 = vmatpush1.bf16.msra.mxu0 %v166
    %190 = vmatprep.subr.bf16.mxu0 0
    %191 = vmatpush2.bf16.msra.mxu0 0
    %192 = vmatprep.subr.bf16.mxu0 0
    %193 = vmatpush2.bf16.msra.mxu0 0
    %194 = vmatprep.subr.bf16.mxu0 0
    %195 = vmatpush2.bf16.msra.mxu0 0
    %196 = vmatprep.subr.bf16.mxu0 0
    %197 = vmatpush2.bf16.msra.mxu0 0
    %198 = vmatprep.subr.bf16.mxu0 0
    %199 = vmatpush2.bf16.msra.mxu0 0
    %200 = vmatprep.subr.bf16.mxu0 0
    %201 = vmatpush2.bf16.msra.mxu0 0
    %202 = vmatprep.subr.bf16.mxu0 0
    %203 = vmatpush2.bf16.msra.mxu0 0
    %204 = vmatprep.subr.bf16.mxu0 0
    %205 = vmatpush2.bf16.msra.mxu0 0
    %206 = vmatprep.mubr.bf16.mxu0 0
    %207 = vmatmul.mubr.bf16.gmra.mxu0 %v172
    %v208 = vpop.f32.mrf.mxu0
    %v209 = vadd.f32 %v157, %v208
    %v210 = vpop.f32.mrf.mxu0
    %v211 = vpop.f32.mrf.mxu0
    %v212 = vadd.f32 %v157, %v211
    %v213 = vpop.f32.mrf.mxu0
    %214 = vdwg.mxu0
    %216 = vrot.lane.b32.xlu0 %v209, 96
    %v217 = vpop.permute.xlu0 %216
    %vm218 = vcmask 64512
    %v219 = vsel %vm218, %v209, 0
    %v221 = vsel %vm218, %v217, 0
    %223 = vmatprep.subr.mxu0 0.0
    %224 = vmatpush1.xpose.msra.mxu0 0.0
    %225 = vmatprep.subr.mxu0 0.0
    %226 = vmatpush1.xpose.msra.mxu0 0.0
    %227 = vmatprep.subr.mxu0 0.0
    %228 = vmatpush1.xpose.msra.mxu0 0.0
    %229 = vmatprep.subr.mxu0 0.0
    %230 = vmatpush1.xpose.msra.mxu0 0.0
    %231 = vmatprep.subr.mxu0 0.0
    %232 = vmatpush1.xpose.msra.mxu0 0.0
    %233 = vmatprep.subr.mxu0 0.0
    %234 = vmatpush1.xpose.msra.mxu0 0.0
    %235 = vmatprep.subr.mxu0 0.0
    %236 = vmatpush1.xpose.msra.mxu0 0.0
    %237 = vmatprep.subr.mxu0 0.0
    %238 = vmatpush1.xpose.msra.mxu0 0.0
    %239 = vmatprep.subr.mxu0 0.0
    %240 = vmatpush1.xpose.msra.mxu0 0.0
    %241 = vmatprep.subr.mxu0 0.0
    %242 = vmatpush1.xpose.msra.mxu0 0.0
    %243 = vmatprep.subr.mxu0 0.0
    %244 = vmatpush1.xpose.msra.mxu0 0.0
    %245 = vmatprep.subr.mxu0 0.0
    %246 = vmatpush1.xpose.msra.mxu0 0.0
    %247 = vmatprep.subr.mxu0 0.0
    %248 = vmatpush1.xpose.msra.mxu0 0.0
    %249 = vmatprep.subr.mxu0 0.0
    %250 = vmatpush1.xpose.msra.mxu0 0.0
    %251 = vmatprep.subr.mxu0 0.0
    %252 = vmatpush1.xpose.msra.mxu0 0.0
    %253 = vmatprep.subr.mxu0 0.0
    %254 = vmatpush1.xpose.msra.mxu0 %v221
    %255 = vmatprep.subr.mxu0 0.0
    %256 = vmatpush2.xpose.msra.mxu0 0.0
    %257 = vmatprep.subr.mxu0 0.0
    %258 = vmatpush2.xpose.msra.mxu0 0.0
    %259 = vmatprep.subr.mxu0 0.0
    %260 = vmatpush2.xpose.msra.mxu0 0.0
    %261 = vmatprep.subr.mxu0 0.0
    %262 = vmatpush2.xpose.msra.mxu0 0.0
    %263 = vmatprep.subr.mxu0 0.0
    %264 = vmatpush2.xpose.msra.mxu0 0.0
    %265 = vmatprep.subr.mxu0 0.0
    %266 = vmatpush2.xpose.msra.mxu0 0.0
    %267 = vmatprep.subr.mxu0 0.0
    %268 = vmatpush2.xpose.msra.mxu0 0.0
    %269 = vmatprep.subr.mxu0 0.0
    %270 = vmatpush2.xpose.msra.mxu0 0.0
    %271 = vmatprep.subr.mxu0 0.0
    %272 = vmatpush2.xpose.msra.mxu0 0.0
    %273 = vmatprep.subr.mxu0 0.0
    %274 = vmatpush2.xpose.msra.mxu0 0.0
    %275 = vmatprep.subr.mxu0 0.0
    %276 = vmatpush2.xpose.msra.mxu0 0.0
    %277 = vmatprep.subr.mxu0 0.0
    %278 = vmatpush2.xpose.msra.mxu0 0.0
    %279 = vmatprep.subr.mxu0 0.0
    %280 = vmatpush2.xpose.msra.mxu0 0.0
    %281 = vmatprep.subr.mxu0 0.0
    %282 = vmatpush2.xpose.msra.mxu0 0.0
    %283 = vmatprep.subr.mxu0 0.0
    %284 = vmatpush2.xpose.msra.mxu0 0.0
    %285 = vmatprep.subr.mxu0 0.0
    %286 = vmatpush2.xpose.msra.mxu0 0.0
    %287 = vmatprep.mubr.f32.mxu0 0.0
    %288 = vmatmul.mubr.f32.gmra.mxu0 %v219
    %v289 = vpop.f32.mrf.mxu0
    %v290 = vadd.f32 0.0, %v289
    %v291 = vpop.f32.mrf.mxu0
    %292 = vdwg.mxu0
    %294 = vrot.lane.b32.xlu0 %v212, 96
    %v295 = vpop.permute.xlu0 %294
    %v296 = vsel %vm218, %v212, 0
    %v298 = vsel %vm218, %v295, 0
    %300 = vmatprep.subr.mxu0 0.0
    %301 = vmatpush1.xpose.msra.mxu0 0.0
    %302 = vmatprep.subr.mxu0 0.0
    %303 = vmatpush1.xpose.msra.mxu0 0.0
    %304 = vmatprep.subr.mxu0 0.0
    %305 = vmatpush1.xpose.msra.mxu0 0.0
    %306 = vmatprep.subr.mxu0 0.0
    %307 = vmatpush1.xpose.msra.mxu0 0.0
    %308 = vmatprep.subr.mxu0 0.0
    %309 = vmatpush1.xpose.msra.mxu0 0.0
    %310 = vmatprep.subr.mxu0 0.0
    %311 = vmatpush1.xpose.msra.mxu0 0.0
    %312 = vmatprep.subr.mxu0 0.0
    %313 = vmatpush1.xpose.msra.mxu0 0.0
    %314 = vmatprep.subr.mxu0 0.0
    %315 = vmatpush1.xpose.msra.mxu0 0.0
    %316 = vmatprep.subr.mxu0 0.0
    %317 = vmatpush1.xpose.msra.mxu0 0.0
    %318 = vmatprep.subr.mxu0 0.0
    %319 = vmatpush1.xpose.msra.mxu0 0.0
    %320 = vmatprep.subr.mxu0 0.0
    %321 = vmatpush1.xpose.msra.mxu0 0.0
    %322 = vmatprep.subr.mxu0 0.0
    %323 = vmatpush1.xpose.msra.mxu0 0.0
    %324 = vmatprep.subr.mxu0 0.0
    %325 = vmatpush1.xpose.msra.mxu0 0.0
    %326 = vmatprep.subr.mxu0 0.0
    %327 = vmatpush1.xpose.msra.mxu0 0.0
    %328 = vmatprep.subr.mxu0 0.0
    %329 = vmatpush1.xpose.msra.mxu0 0.0
    %330 = vmatprep.subr.mxu0 0.0
    %331 = vmatpush1.xpose.msra.mxu0 %v298
    %332 = vmatprep.subr.mxu0 0.0
    %333 = vmatpush2.xpose.msra.mxu0 0.0
    %334 = vmatprep.subr.mxu0 0.0
    %335 = vmatpush2.xpose.msra.mxu0 0.0
    %336 = vmatprep.subr.mxu0 0.0
    %337 = vmatpush2.xpose.msra.mxu0 0.0
    %338 = vmatprep.subr.mxu0 0.0
    %339 = vmatpush2.xpose.msra.mxu0 0.0
    %340 = vmatprep.subr.mxu0 0.0
    %341 = vmatpush2.xpose.msra.mxu0 0.0
    %342 = vmatprep.subr.mxu0 0.0
    %343 = vmatpush2.xpose.msra.mxu0 0.0
    %344 = vmatprep.subr.mxu0 0.0
    %345 = vmatpush2.xpose.msra.mxu0 0.0
    %346 = vmatprep.subr.mxu0 0.0
    %347 = vmatpush2.xpose.msra.mxu0 0.0
    %348 = vmatprep.subr.mxu0 0.0
    %349 = vmatpush2.xpose.msra.mxu0 0.0
    %350 = vmatprep.subr.mxu0 0.0
    %351 = vmatpush2.xpose.msra.mxu0 0.0
    %352 = vmatprep.subr.mxu0 0.0
    %353 = vmatpush2.xpose.msra.mxu0 0.0
    %354 = vmatprep.subr.mxu0 0.0
    %355 = vmatpush2.xpose.msra.mxu0 0.0
    %356 = vmatprep.subr.mxu0 0.0
    %357 = vmatpush2.xpose.msra.mxu0 0.0
    %358 = vmatprep.subr.mxu0 0.0
    %359 = vmatpush2.xpose.msra.mxu0 0.0
    %360 = vmatprep.subr.mxu0 0.0
    %361 = vmatpush2.xpose.msra.mxu0 0.0
    %362 = vmatprep.subr.mxu0 0.0
    %363 = vmatpush2.xpose.msra.mxu0 0.0
    %364 = vmatprep.mubr.f32.mxu0 0.0
    %365 = vmatmul.mubr.f32.gmra.mxu0 %v296
    %v366 = vpop.f32.mrf.mxu0
    %v367 = vadd.f32 0.0, %v366
    %v368 = vpop.f32.mrf.mxu0
    %369 = vdwg.mxu0
    %v370 = vmul.f32 %v290, 0.35355338
    %v371 = vmul.f32 %v367, 0.35355338
    %v372 = vsel %vm218, %v370, -inf
    %373 = vmax.xlane.f32.xlu0 %v372
    %v374 = vpop.xlane.xlu0 %373
    %v375 = vsel %vm218, %v371, -inf
    %376 = vmax.xlane.f32.xlu0 %v375
    %v377 = vpop.xlane.xlu0 %376
    %v378 = vsub.f32 %v370, %v374
    %v379 = vsub.f32 %v371, %v377
    %v380 = vmul.f32 %v378, 1.442695
    %v381 = vpow.pop %v380
    %v382 = vmul.f32 %v379, 1.442695
    %v383 = vpow.pop %v382
    %v384 = vsel %vm218, %v381, 0.0
    %385 = vadd.xlane.f32.xlu0 %v384
    %v386 = vpop.xlane.xlu0 %385
    %v387 = vsel %vm218, %v383, 0.0
    %388 = vadd.xlane.f32.xlu0 %v387
    %v389 = vpop.xlane.xlu0 %388
    %v390 = vrcp.pop %v386
    %v391 = vmul.f32 %v381, %v390
    %v392 = vrcp.pop %v389
    %v393 = vmul.f32 %v383, %v392
    %394 = vrot.lane.b32.xlu0 %v209, 64
    %v395 = vpop.permute.xlu0 %394
    %v398 = vsel %vm218, %v391, 0
    %400 = vmatprep.subr.mxu0 0.0
    %401 = vmatpush1.msra.mxu0 0.0
    %402 = vmatprep.subr.mxu0 0.0
    %403 = vmatpush1.msra.mxu0 0.0
    %404 = vmatprep.subr.mxu0 0.0
    %405 = vmatpush1.msra.mxu0 0.0
    %406 = vmatprep.subr.mxu0 0.0
    %407 = vmatpush1.msra.mxu0 0.0
    %408 = vmatprep.subr.mxu0 0.0
    %409 = vmatpush1.msra.mxu0 0.0
    %410 = vmatprep.subr.mxu0 0.0
    %411 = vmatpush1.msra.mxu0 0.0
    %412 = vmatprep.subr.mxu0 0.0
    %413 = vmatpush1.msra.mxu0 0.0
    %414 = vmatprep.subr.mxu0 0.0
    %415 = vmatpush1.msra.mxu0 0.0
    %416 = vmatprep.subr.mxu0 0.0
    %417 = vmatpush1.msra.mxu0 0.0
    %418 = vmatprep.subr.mxu0 0.0
    %419 = vmatpush1.msra.mxu0 0.0
    %420 = vmatprep.subr.mxu0 0.0
    %421 = vmatpush1.msra.mxu0 0.0
    %422 = vmatprep.subr.mxu0 0.0
    %423 = vmatpush1.msra.mxu0 0.0
    %424 = vmatprep.subr.mxu0 0.0
    %425 = vmatpush1.msra.mxu0 0.0
    %426 = vmatprep.subr.mxu0 0.0
    %427 = vmatpush1.msra.mxu0 0.0
    %428 = vmatprep.subr.mxu0 0.0
    %429 = vmatpush1.msra.mxu0 0.0
    %430 = vmatprep.subr.mxu0 0.0
    %431 = vmatpush1.msra.mxu0 %v395
    %432 = vmatprep.subr.mxu0 0.0
    %433 = vmatpush2.msra.mxu0 0.0
    %434 = vmatprep.subr.mxu0 0.0
    %435 = vmatpush2.msra.mxu0 0.0
    %436 = vmatprep.subr.mxu0 0.0
    %437 = vmatpush2.msra.mxu0 0.0
    %438 = vmatprep.subr.mxu0 0.0
    %439 = vmatpush2.msra.mxu0 0.0
    %440 = vmatprep.subr.mxu0 0.0
    %441 = vmatpush2.msra.mxu0 0.0
    %442 = vmatprep.subr.mxu0 0.0
    %443 = vmatpush2.msra.mxu0 0.0
    %444 = vmatprep.subr.mxu0 0.0
    %445 = vmatpush2.msra.mxu0 0.0
    %446 = vmatprep.subr.mxu0 0.0
    %447 = vmatpush2.msra.mxu0 0.0
    %448 = vmatprep.subr.mxu0 0.0
    %449 = vmatpush2.msra.mxu0 0.0
    %450 = vmatprep.subr.mxu0 0.0
    %451 = vmatpush2.msra.mxu0 0.0
    %452 = vmatprep.subr.mxu0 0.0
    %453 = vmatpush2.msra.mxu0 0.0
    %454 = vmatprep.subr.mxu0 0.0
    %455 = vmatpush2.msra.mxu0 0.0
    %456 = vmatprep.subr.mxu0 0.0
    %457 = vmatpush2.msra.mxu0 0.0
    %458 = vmatprep.subr.mxu0 0.0
    %459 = vmatpush2.msra.mxu0 0.0
    %460 = vmatprep.subr.mxu0 0.0
    %461 = vmatpush2.msra.mxu0 0.0
    %462 = vmatprep.subr.mxu0 0.0
    %463 = vmatpush2.msra.mxu0 0.0
    %464 = vmatprep.mubr.f32.mxu0 0.0
    %465 = vmatmul.mubr.f32.gmra.mxu0 %v398
    %v466 = vpop.f32.mrf.mxu0
    %v467 = vadd.f32 0.0, %v466
    %v468 = vpop.f32.mrf.mxu0
    %469 = vdwg.mxu0
    %470 = vrot.lane.b32.xlu0 %v212, 64
    %v471 = vpop.permute.xlu0 %470
    %v474 = vsel %vm218, %v393, 0
    %476 = vmatprep.subr.mxu0 0.0
    %477 = vmatpush1.msra.mxu0 0.0
    %478 = vmatprep.subr.mxu0 0.0
    %479 = vmatpush1.msra.mxu0 0.0
    %480 = vmatprep.subr.mxu0 0.0
    %481 = vmatpush1.msra.mxu0 0.0
    %482 = vmatprep.subr.mxu0 0.0
    %483 = vmatpush1.msra.mxu0 0.0
    %484 = vmatprep.subr.mxu0 0.0
    %485 = vmatpush1.msra.mxu0 0.0
    %486 = vmatprep.subr.mxu0 0.0
    %487 = vmatpush1.msra.mxu0 0.0
    %488 = vmatprep.subr.mxu0 0.0
    %489 = vmatpush1.msra.mxu0 0.0
    %490 = vmatprep.subr.mxu0 0.0
    %491 = vmatpush1.msra.mxu0 0.0
    %492 = vmatprep.subr.mxu0 0.0
    %493 = vmatpush1.msra.mxu0 0.0
    %494 = vmatprep.subr.mxu0 0.0
    %495 = vmatpush1.msra.mxu0 0.0
    %496 = vmatprep.subr.mxu0 0.0
    %497 = vmatpush1.msra.mxu0 0.0
    %498 = vmatprep.subr.mxu0 0.0
    %499 = vmatpush1.msra.mxu0 0.0
    %500 = vmatprep.subr.mxu0 0.0
    %501 = vmatpush1.msra.mxu0 0.0
    %502 = vmatprep.subr.mxu0 0.0
    %503 = vmatpush1.msra.mxu0 0.0
    %504 = vmatprep.subr.mxu0 0.0
    %505 = vmatpush1.msra.mxu0 0.0
    %506 = vmatprep.subr.mxu0 0.0
    %507 = vmatpush1.msra.mxu0 %v471
    %508 = vmatprep.subr.mxu0 0.0
    %509 = vmatpush2.msra.mxu0 0.0
    %510 = vmatprep.subr.mxu0 0.0
    %511 = vmatpush2.msra.mxu0 0.0
    %512 = vmatprep.subr.mxu0 0.0
    %513 = vmatpush2.msra.mxu0 0.0
    %514 = vmatprep.subr.mxu0 0.0
    %515 = vmatpush2.msra.mxu0 0.0
    %516 = vmatprep.subr.mxu0 0.0
    %517 = vmatpush2.msra.mxu0 0.0
    %518 = vmatprep.subr.mxu0 0.0
    %519 = vmatpush2.msra.mxu0 0.0
    %520 = vmatprep.subr.mxu0 0.0
    %521 = vmatpush2.msra.mxu0 0.0
    %522 = vmatprep.subr.mxu0 0.0
    %523 = vmatpush2.msra.mxu0 0.0
    %524 = vmatprep.subr.mxu0 0.0
    %525 = vmatpush2.msra.mxu0 0.0
    %526 = vmatprep.subr.mxu0 0.0
    %527 = vmatpush2.msra.mxu0 0.0
    %528 = vmatprep.subr.mxu0 0.0
    %529 = vmatpush2.msra.mxu0 0.0
    %530 = vmatprep.subr.mxu0 0.0
    %531 = vmatpush2.msra.mxu0 0.0
    %532 = vmatprep.subr.mxu0 0.0
    %533 = vmatpush2.msra.mxu0 0.0
    %534 = vmatprep.subr.mxu0 0.0
    %535 = vmatpush2.msra.mxu0 0.0
    %536 = vmatprep.subr.mxu0 0.0
    %537 = vmatpush2.msra.mxu0 0.0
    %538 = vmatprep.subr.mxu0 0.0
    %539 = vmatpush2.msra.mxu0 0.0
    %540 = vmatprep.mubr.f32.mxu0 0.0
    %541 = vmatmul.mubr.f32.gmra.mxu0 %v474
    %v542 = vpop.f32.mrf.mxu0
    %v543 = vadd.f32 0.0, %v542
    %v544 = vpop.f32.mrf.mxu0
    %545 = vdwg.mxu0
    %546 = vrot.lane.b32.xlu0 %v209, 120
    %v547 = vpop.permute.xlu0 %546
    %548 = vrot.lane.b32.xlu0 %v209, 88
    %v549 = vpop.permute.xlu0 %548
    %v550 = vsel %vm218, %v547, 0
    %v552 = vsel %vm218, %v549, 0
    %554 = vmatprep.subr.mxu0 0.0
    %555 = vmatpush1.xpose.msra.mxu0 0.0
    %556 = vmatprep.subr.mxu0 0.0
    %557 = vmatpush1.xpose.msra.mxu0 0.0
    %558 = vmatprep.subr.mxu0 0.0
    %559 = vmatpush1.xpose.msra.mxu0 0.0
    %560 = vmatprep.subr.mxu0 0.0
    %561 = vmatpush1.xpose.msra.mxu0 0.0
    %562 = vmatprep.subr.mxu0 0.0
    %563 = vmatpush1.xpose.msra.mxu0 0.0
    %564 = vmatprep.subr.mxu0 0.0
    %565 = vmatpush1.xpose.msra.mxu0 0.0
    %566 = vmatprep.subr.mxu0 0.0
    %567 = vmatpush1.xpose.msra.mxu0 0.0
    %568 = vmatprep.subr.mxu0 0.0
    %569 = vmatpush1.xpose.msra.mxu0 0.0
    %570 = vmatprep.subr.mxu0 0.0
    %571 = vmatpush1.xpose.msra.mxu0 0.0
    %572 = vmatprep.subr.mxu0 0.0
    %573 = vmatpush1.xpose.msra.mxu0 0.0
    %574 = vmatprep.subr.mxu0 0.0
    %575 = vmatpush1.xpose.msra.mxu0 0.0
    %576 = vmatprep.subr.mxu0 0.0
    %577 = vmatpush1.xpose.msra.mxu0 0.0
    %578 = vmatprep.subr.mxu0 0.0
    %579 = vmatpush1.xpose.msra.mxu0 0.0
    %580 = vmatprep.subr.mxu0 0.0
    %581 = vmatpush1.xpose.msra.mxu0 0.0
    %582 = vmatprep.subr.mxu0 0.0
    %583 = vmatpush1.xpose.msra.mxu0 0.0
    %584 = vmatprep.subr.mxu0 0.0
    %585 = vmatpush1.xpose.msra.mxu0 %v552
    %586 = vmatprep.subr.mxu0 0.0
    %587 = vmatpush2.xpose.msra.mxu0 0.0
    %588 = vmatprep.subr.mxu0 0.0
    %589 = vmatpush2.xpose.msra.mxu0 0.0
    %590 = vmatprep.subr.mxu0 0.0
    %591 = vmatpush2.xpose.msra.mxu0 0.0
    %592 = vmatprep.subr.mxu0 0.0
    %593 = vmatpush2.xpose.msra.mxu0 0.0
    %594 = vmatprep.subr.mxu0 0.0
    %595 = vmatpush2.xpose.msra.mxu0 0.0
    %596 = vmatprep.subr.mxu0 0.0
    %597 = vmatpush2.xpose.msra.mxu0 0.0
    %598 = vmatprep.subr.mxu0 0.0
    %599 = vmatpush2.xpose.msra.mxu0 0.0
    %600 = vmatprep.subr.mxu0 0.0
    %601 = vmatpush2.xpose.msra.mxu0 0.0
    %602 = vmatprep.subr.mxu0 0.0
    %603 = vmatpush2.xpose.msra.mxu0 0.0
    %604 = vmatprep.subr.mxu0 0.0
    %605 = vmatpush2.xpose.msra.mxu0 0.0
    %606 = vmatprep.subr.mxu0 0.0
    %607 = vmatpush2.xpose.msra.mxu0 0.0
    %608 = vmatprep.subr.mxu0 0.0
    %609 = vmatpush2.xpose.msra.mxu0 0.0
    %610 = vmatprep.subr.mxu0 0.0
    %611 = vmatpush2.xpose.msra.mxu0 0.0
    %612 = vmatprep.subr.mxu0 0.0
    %613 = vmatpush2.xpose.msra.mxu0 0.0
    %614 = vmatprep.subr.mxu0 0.0
    %615 = vmatpush2.xpose.msra.mxu0 0.0
    %616 = vmatprep.subr.mxu0 0.0
    %617 = vmatpush2.xpose.msra.mxu0 0.0
    %618 = vmatprep.mubr.f32.mxu0 0.0
    %619 = vmatmul.mubr.f32.gmra.mxu0 %v550
    %v620 = vpop.f32.mrf.mxu0
    %v621 = vadd.f32 0.0, %v620
    %v622 = vpop.f32.mrf.mxu0
    %623 = vdwg.mxu0
    %624 = vrot.lane.b32.xlu0 %v212, 120
    %v625 = vpop.permute.xlu0 %624
    %626 = vrot.lane.b32.xlu0 %v212, 88
    %v627 = vpop.permute.xlu0 %626
    %v628 = vsel %vm218, %v625, 0
    %v630 = vsel %vm218, %v627, 0
    %632 = vmatprep.subr.mxu0 0.0
    %633 = vmatpush1.xpose.msra.mxu0 0.0
    %634 = vmatprep.subr.mxu0 0.0
    %635 = vmatpush1.xpose.msra.mxu0 0.0
    %636 = vmatprep.subr.mxu0 0.0
    %637 = vmatpush1.xpose.msra.mxu0 0.0
    %638 = vmatprep.subr.mxu0 0.0
    %639 = vmatpush1.xpose.msra.mxu0 0.0
    %640 = vmatprep.subr.mxu0 0.0
    %641 = vmatpush1.xpose.msra.mxu0 0.0
    %642 = vmatprep.subr.mxu0 0.0
    %643 = vmatpush1.xpose.msra.mxu0 0.0
    %644 = vmatprep.subr.mxu0 0.0
    %645 = vmatpush1.xpose.msra.mxu0 0.0
    %646 = vmatprep.subr.mxu0 0.0
    %647 = vmatpush1.xpose.msra.mxu0 0.0
    %648 = vmatprep.subr.mxu0 0.0
    %649 = vmatpush1.xpose.msra.mxu0 0.0
    %650 = vmatprep.subr.mxu0 0.0
    %651 = vmatpush1.xpose.msra.mxu0 0.0
    %652 = vmatprep.subr.mxu0 0.0
    %653 = vmatpush1.xpose.msra.mxu0 0.0
    %654 = vmatprep.subr.mxu0 0.0
    %655 = vmatpush1.xpose.msra.mxu0 0.0
    %656 = vmatprep.subr.mxu0 0.0
    %657 = vmatpush1.xpose.msra.mxu0 0.0
    %658 = vmatprep.subr.mxu0 0.0
    %659 = vmatpush1.xpose.msra.mxu0 0.0
    %660 = vmatprep.subr.mxu0 0.0
    %661 = vmatpush1.xpose.msra.mxu0 0.0
    %662 = vmatprep.subr.mxu0 0.0
    %663 = vmatpush1.xpose.msra.mxu0 %v630
    %664 = vmatprep.subr.mxu0 0.0
    %665 = vmatpush2.xpose.msra.mxu0 0.0
    %666 = vmatprep.subr.mxu0 0.0
    %667 = vmatpush2.xpose.msra.mxu0 0.0
    %668 = vmatprep.subr.mxu0 0.0
    %669 = vmatpush2.xpose.msra.mxu0 0.0
    %670 = vmatprep.subr.mxu0 0.0
    %671 = vmatpush2.xpose.msra.mxu0 0.0
    %672 = vmatprep.subr.mxu0 0.0
    %673 = vmatpush2.xpose.msra.mxu0 0.0
    %674 = vmatprep.subr.mxu0 0.0
    %675 = vmatpush2.xpose.msra.mxu0 0.0
    %676 = vmatprep.subr.mxu0 0.0
    %677 = vmatpush2.xpose.msra.mxu0 0.0
    %678 = vmatprep.subr.mxu0 0.0
    %679 = vmatpush2.xpose.msra.mxu0 0.0
    %680 = vmatprep.subr.mxu0 0.0
    %681 = vmatpush2.xpose.msra.mxu0 0.0
    %682 = vmatprep.subr.mxu0 0.0
    %683 = vmatpush2.xpose.msra.mxu0 0.0
    %684 = vmatprep.subr.mxu0 0.0
    %685 = vmatpush2.xpose.msra.mxu0 0.0
    %686 = vmatprep.subr.mxu0 0.0
    %687 = vmatpush2.xpose.msra.mxu0 0.0
    %688 = vmatprep.subr.mxu0 0.0
    %689 = vmatpush2.xpose.msra.mxu0 0.0
    %690 = vmatprep.subr.mxu0 0.0
    %691 = vmatpush2.xpose.msra.mxu0 0.0
    %692 = vmatprep.subr.mxu0 0.0
    %693 = vmatpush2.xpose.msra.mxu0 0.0
    %694 = vmatprep.subr.mxu0 0.0
    %695 = vmatpush2.xpose.msra.mxu0 0.0
    %696 = vmatprep.mubr.f32.mxu0 0.0
    %697 = vmatmul.mubr.f32.gmra.mxu0 %v628
    %v698 = vpop.f32.mrf.mxu0
    %v699 = vadd.f32 0.0, %v698
    %v700 = vpop.f32.mrf.mxu0
    %701 = vdwg.mxu0
    %v702 = vmul.f32 %v621, 0.35355338
    %v703 = vmul.f32 %v699, 0.35355338
    %v704 = vsel %vm218, %v702, -inf
    %705 = vmax.xlane.f32.xlu0 %v704
    %v706 = vpop.xlane.xlu0 %705
    %v707 = vsel %vm218, %v703, -inf
    %708 = vmax.xlane.f32.xlu0 %v707
    %v709 = vpop.xlane.xlu0 %708
    %v710 = vsub.f32 %v702, %v706
    %v711 = vsub.f32 %v703, %v709
    %v712 = vmul.f32 %v710, 1.442695
    %v713 = vpow.pop %v712
    %v714 = vmul.f32 %v711, 1.442695
    %v715 = vpow.pop %v714
    %v716 = vsel %vm218, %v713, 0.0
    %717 = vadd.xlane.f32.xlu0 %v716
    %v718 = vpop.xlane.xlu0 %717
    %v719 = vsel %vm218, %v715, 0.0
    %720 = vadd.xlane.f32.xlu0 %v719
    %v721 = vpop.xlane.xlu0 %720
    %v722 = vrcp.pop %v718
    %v723 = vmul.f32 %v713, %v722
    %v724 = vrcp.pop %v721
    %v725 = vmul.f32 %v715, %v724
    %726 = vrot.lane.b32.xlu0 %v209, 56
    %v727 = vpop.permute.xlu0 %726
    %v730 = vsel %vm218, %v723, 0
    %732 = vmatprep.subr.mxu0 0.0
    %733 = vmatpush1.msra.mxu0 0.0
    %734 = vmatprep.subr.mxu0 0.0
    %735 = vmatpush1.msra.mxu0 0.0
    %736 = vmatprep.subr.mxu0 0.0
    %737 = vmatpush1.msra.mxu0 0.0
    %738 = vmatprep.subr.mxu0 0.0
    %739 = vmatpush1.msra.mxu0 0.0
    %740 = vmatprep.subr.mxu0 0.0
    %741 = vmatpush1.msra.mxu0 0.0
    %742 = vmatprep.subr.mxu0 0.0
    %743 = vmatpush1.msra.mxu0 0.0
    %744 = vmatprep.subr.mxu0 0.0
    %745 = vmatpush1.msra.mxu0 0.0
    %746 = vmatprep.subr.mxu0 0.0
    %747 = vmatpush1.msra.mxu0 0.0
    %748 = vmatprep.subr.mxu0 0.0
    %749 = vmatpush1.msra.mxu0 0.0
    %750 = vmatprep.subr.mxu0 0.0
    %751 = vmatpush1.msra.mxu0 0.0
    %752 = vmatprep.subr.mxu0 0.0
    %753 = vmatpush1.msra.mxu0 0.0
    %754 = vmatprep.subr.mxu0 0.0
    %755 = vmatpush1.msra.mxu0 0.0
    %756 = vmatprep.subr.mxu0 0.0
    %757 = vmatpush1.msra.mxu0 0.0
    %758 = vmatprep.subr.mxu0 0.0
    %759 = vmatpush1.msra.mxu0 0.0
    %760 = vmatprep.subr.mxu0 0.0
    %761 = vmatpush1.msra.mxu0 0.0
    %762 = vmatprep.subr.mxu0 0.0
    %763 = vmatpush1.msra.mxu0 %v727
    %764 = vmatprep.subr.mxu0 0.0
    %765 = vmatpush2.msra.mxu0 0.0
    %766 = vmatprep.subr.mxu0 0.0
    %767 = vmatpush2.msra.mxu0 0.0
    %768 = vmatprep.subr.mxu0 0.0
    %769 = vmatpush2.msra.mxu0 0.0
    %770 = vmatprep.subr.mxu0 0.0
    %771 = vmatpush2.msra.mxu0 0.0
    %772 = vmatprep.subr.mxu0 0.0
    %773 = vmatpush2.msra.mxu0 0.0
    %774 = vmatprep.subr.mxu0 0.0
    %775 = vmatpush2.msra.mxu0 0.0
    %776 = vmatprep.subr.mxu0 0.0
    %777 = vmatpush2.msra.mxu0 0.0
    %778 = vmatprep.subr.mxu0 0.0
    %779 = vmatpush2.msra.mxu0 0.0
    %780 = vmatprep.subr.mxu0 0.0
    %781 = vmatpush2.msra.mxu0 0.0
    %782 = vmatprep.subr.mxu0 0.0
    %783 = vmatpush2.msra.mxu0 0.0
    %784 = vmatprep.subr.mxu0 0.0
    %785 = vmatpush2.msra.mxu0 0.0
    %786 = vmatprep.subr.mxu0 0.0
    %787 = vmatpush2.msra.mxu0 0.0
    %788 = vmatprep.subr.mxu0 0.0
    %789 = vmatpush2.msra.mxu0 0.0
    %790 = vmatprep.subr.mxu0 0.0
    %791 = vmatpush2.msra.mxu0 0.0
    %792 = vmatprep.subr.mxu0 0.0
    %793 = vmatpush2.msra.mxu0 0.0
    %794 = vmatprep.subr.mxu0 0.0
    %795 = vmatpush2.msra.mxu0 0.0
    %796 = vmatprep.mubr.f32.mxu0 0.0
    %797 = vmatmul.mubr.f32.gmra.mxu0 %v730
    %v798 = vpop.f32.mrf.mxu0
    %v799 = vadd.f32 0.0, %v798
    %v800 = vpop.f32.mrf.mxu0
    %801 = vdwg.mxu0
    %802 = vrot.lane.b32.xlu0 %v212, 56
    %v803 = vpop.permute.xlu0 %802
    %v806 = vsel %vm218, %v725, 0
    %808 = vmatprep.subr.mxu0 0.0
    %809 = vmatpush1.msra.mxu0 0.0
    %810 = vmatprep.subr.mxu0 0.0
    %811 = vmatpush1.msra.mxu0 0.0
    %812 = vmatprep.subr.mxu0 0.0
    %813 = vmatpush1.msra.mxu0 0.0
    %814 = vmatprep.subr.mxu0 0.0
    %815 = vmatpush1.msra.mxu0 0.0
    %816 = vmatprep.subr.mxu0 0.0
    %817 = vmatpush1.msra.mxu0 0.0
    %818 = vmatprep.subr.mxu0 0.0
    %819 = vmatpush1.msra.mxu0 0.0
    %820 = vmatprep.subr.mxu0 0.0
    %821 = vmatpush1.msra.mxu0 0.0
    %822 = vmatprep.subr.mxu0 0.0
    %823 = vmatpush1.msra.mxu0 0.0
    %824 = vmatprep.subr.mxu0 0.0
    %825 = vmatpush1.msra.mxu0 0.0
    %826 = vmatprep.subr.mxu0 0.0
    %827 = vmatpush1.msra.mxu0 0.0
    %828 = vmatprep.subr.mxu0 0.0
    %829 = vmatpush1.msra.mxu0 0.0
    %830 = vmatprep.subr.mxu0 0.0
    %831 = vmatpush1.msra.mxu0 0.0
    %832 = vmatprep.subr.mxu0 0.0
    %833 = vmatpush1.msra.mxu0 0.0
    %834 = vmatprep.subr.mxu0 0.0
    %835 = vmatpush1.msra.mxu0 0.0
    %836 = vmatprep.subr.mxu0 0.0
    %837 = vmatpush1.msra.mxu0 0.0
    %838 = vmatprep.subr.mxu0 0.0
    %839 = vmatpush1.msra.mxu0 %v803
    %840 = vmatprep.subr.mxu0 0.0
    %841 = vmatpush2.msra.mxu0 0.0
    %842 = vmatprep.subr.mxu0 0.0
    %843 = vmatpush2.msra.mxu0 0.0
    %844 = vmatprep.subr.mxu0 0.0
    %845 = vmatpush2.msra.mxu0 0.0
    %846 = vmatprep.subr.mxu0 0.0
    %847 = vmatpush2.msra.mxu0 0.0
    %848 = vmatprep.subr.mxu0 0.0
    %849 = vmatpush2.msra.mxu0 0.0
    %850 = vmatprep.subr.mxu0 0.0
    %851 = vmatpush2.msra.mxu0 0.0
    %852 = vmatprep.subr.mxu0 0.0
    %853 = vmatpush2.msra.mxu0 0.0
    %854 = vmatprep.subr.mxu0 0.0
    %855 = vmatpush2.msra.mxu0 0.0
    %856 = vmatprep.subr.mxu0 0.0
    %857 = vmatpush2.msra.mxu0 0.0
    %858 = vmatprep.subr.mxu0 0.0
    %859 = vmatpush2.msra.mxu0 0.0
    %860 = vmatprep.subr.mxu0 0.0
    %861 = vmatpush2.msra.mxu0 0.0
    %862 = vmatprep.subr.mxu0 0.0
    %863 = vmatpush2.msra.mxu0 0.0
    %864 = vmatprep.subr.mxu0 0.0
    %865 = vmatpush2.msra.mxu0 0.0
    %866 = vmatprep.subr.mxu0 0.0
    %867 = vmatpush2.msra.mxu0 0.0
    %868 = vmatprep.subr.mxu0 0.0
    %869 = vmatpush2.msra.mxu0 0.0
    %870 = vmatprep.subr.mxu0 0.0
    %871 = vmatpush2.msra.mxu0 0.0
    %872 = vmatprep.mubr.f32.mxu0 0.0
    %873 = vmatmul.mubr.f32.gmra.mxu0 %v806
    %v874 = vpop.f32.mrf.mxu0
    %v875 = vadd.f32 0.0, %v874
    %v876 = vpop.f32.mrf.mxu0
    %877 = vdwg.mxu0
    %878 = vrot.lane.b32.xlu0 %v209, 112
    %v879 = vpop.permute.xlu0 %878
    %880 = vrot.lane.b32.xlu0 %v209, 80
    %v881 = vpop.permute.xlu0 %880
    %v882 = vsel %vm218, %v879, 0
    %v884 = vsel %vm218, %v881, 0
    %886 = vmatprep.subr.mxu0 0.0
    %887 = vmatpush1.xpose.msra.mxu0 0.0
    %888 = vmatprep.subr.mxu0 0.0
    %889 = vmatpush1.xpose.msra.mxu0 0.0
    %890 = vmatprep.subr.mxu0 0.0
    %891 = vmatpush1.xpose.msra.mxu0 0.0
    %892 = vmatprep.subr.mxu0 0.0
    %893 = vmatpush1.xpose.msra.mxu0 0.0
    %894 = vmatprep.subr.mxu0 0.0
    %895 = vmatpush1.xpose.msra.mxu0 0.0
    %896 = vmatprep.subr.mxu0 0.0
    %897 = vmatpush1.xpose.msra.mxu0 0.0
    %898 = vmatprep.subr.mxu0 0.0
    %899 = vmatpush1.xpose.msra.mxu0 0.0
    %900 = vmatprep.subr.mxu0 0.0
    %901 = vmatpush1.xpose.msra.mxu0 0.0
    %902 = vmatprep.subr.mxu0 0.0
    %903 = vmatpush1.xpose.msra.mxu0 0.0
    %904 = vmatprep.subr.mxu0 0.0
    %905 = vmatpush1.xpose.msra.mxu0 0.0
    %906 = vmatprep.subr.mxu0 0.0
    %907 = vmatpush1.xpose.msra.mxu0 0.0
    %908 = vmatprep.subr.mxu0 0.0
    %909 = vmatpush1.xpose.msra.mxu0 0.0
    %910 = vmatprep.subr.mxu0 0.0
    %911 = vmatpush1.xpose.msra.mxu0 0.0
    %912 = vmatprep.subr.mxu0 0.0
    %913 = vmatpush1.xpose.msra.mxu0 0.0
    %914 = vmatprep.subr.mxu0 0.0
    %915 = vmatpush1.xpose.msra.mxu0 0.0
    %916 = vmatprep.subr.mxu0 0.0
    %917 = vmatpush1.xpose.msra.mxu0 %v884
    %918 = vmatprep.subr.mxu0 0.0
    %919 = vmatpush2.xpose.msra.mxu0 0.0
    %920 = vmatprep.subr.mxu0 0.0
    %921 = vmatpush2.xpose.msra.mxu0 0.0
    %922 = vmatprep.subr.mxu0 0.0
    %923 = vmatpush2.xpose.msra.mxu0 0.0
    %924 = vmatprep.subr.mxu0 0.0
    %925 = vmatpush2.xpose.msra.mxu0 0.0
    %926 = vmatprep.subr.mxu0 0.0
    %927 = vmatpush2.xpose.msra.mxu0 0.0
    %928 = vmatprep.subr.mxu0 0.0
    %929 = vmatpush2.xpose.msra.mxu0 0.0
    %930 = vmatprep.subr.mxu0 0.0
    %931 = vmatpush2.xpose.msra.mxu0 0.0
    %932 = vmatprep.subr.mxu0 0.0
    %933 = vmatpush2.xpose.msra.mxu0 0.0
    %934 = vmatprep.subr.mxu0 0.0
    %935 = vmatpush2.xpose.msra.mxu0 0.0
    %936 = vmatprep.subr.mxu0 0.0
    %937 = vmatpush2.xpose.msra.mxu0 0.0
    %938 = vmatprep.subr.mxu0 0.0
    %939 = vmatpush2.xpose.msra.mxu0 0.0
    %940 = vmatprep.subr.mxu0 0.0
    %941 = vmatpush2.xpose.msra.mxu0 0.0
    %942 = vmatprep.subr.mxu0 0.0
    %943 = vmatpush2.xpose.msra.mxu0 0.0
    %944 = vmatprep.subr.mxu0 0.0
    %945 = vmatpush2.xpose.msra.mxu0 0.0
    %946 = vmatprep.subr.mxu0 0.0
    %947 = vmatpush2.xpose.msra.mxu0 0.0
    %948 = vmatprep.subr.mxu0 0.0
    %949 = vmatpush2.xpose.msra.mxu0 0.0
    %950 = vmatprep.mubr.f32.mxu0 0.0
    %951 = vmatmul.mubr.f32.gmra.mxu0 %v882
    %v952 = vpop.f32.mrf.mxu0
    %v953 = vadd.f32 0.0, %v952
    %v954 = vpop.f32.mrf.mxu0
    %955 = vdwg.mxu0
    %956 = vrot.lane.b32.xlu0 %v212, 112
    %v957 = vpop.permute.xlu0 %956
    %958 = vrot.lane.b32.xlu0 %v212, 80
    %v959 = vpop.permute.xlu0 %958
    %v960 = vsel %vm218, %v957, 0
    %v962 = vsel %vm218, %v959, 0
    %964 = vmatprep.subr.mxu0 0.0
    %965 = vmatpush1.xpose.msra.mxu0 0.0
    %966 = vmatprep.subr.mxu0 0.0
    %967 = vmatpush1.xpose.msra.mxu0 0.0
    %968 = vmatprep.subr.mxu0 0.0
    %969 = vmatpush1.xpose.msra.mxu0 0.0
    %970 = vmatprep.subr.mxu0 0.0
    %971 = vmatpush1.xpose.msra.mxu0 0.0
    %972 = vmatprep.subr.mxu0 0.0
    %973 = vmatpush1.xpose.msra.mxu0 0.0
    %974 = vmatprep.subr.mxu0 0.0
    %975 = vmatpush1.xpose.msra.mxu0 0.0
    %976 = vmatprep.subr.mxu0 0.0
    %977 = vmatpush1.xpose.msra.mxu0 0.0
    %978 = vmatprep.subr.mxu0 0.0
    %979 = vmatpush1.xpose.msra.mxu0 0.0
    %980 = vmatprep.subr.mxu0 0.0
    %981 = vmatpush1.xpose.msra.mxu0 0.0
    %982 = vmatprep.subr.mxu0 0.0
    %983 = vmatpush1.xpose.msra.mxu0 0.0
    %984 = vmatprep.subr.mxu0 0.0
    %985 = vmatpush1.xpose.msra.mxu0 0.0
    %986 = vmatprep.subr.mxu0 0.0
    %987 = vmatpush1.xpose.msra.mxu0 0.0
    %988 = vmatprep.subr.mxu0 0.0
    %989 = vmatpush1.xpose.msra.mxu0 0.0
    %990 = vmatprep.subr.mxu0 0.0
    %991 = vmatpush1.xpose.msra.mxu0 0.0
    %992 = vmatprep.subr.mxu0 0.0
    %993 = vmatpush1.xpose.msra.mxu0 0.0
    %994 = vmatprep.subr.mxu0 0.0
    %995 = vmatpush1.xpose.msra.mxu0 %v962
    %996 = vmatprep.subr.mxu0 0.0
    %997 = vmatpush2.xpose.msra.mxu0 0.0
    %998 = vmatprep.subr.mxu0 0.0
    %999 = vmatpush2.xpose.msra.mxu0 0.0
    %1000 = vmatprep.subr.mxu0 0.0
    %1001 = vmatpush2.xpose.msra.mxu0 0.0
    %1002 = vmatprep.subr.mxu0 0.0
    %1003 = vmatpush2.xpose.msra.mxu0 0.0
    %1004 = vmatprep.subr.mxu0 0.0
    %1005 = vmatpush2.xpose.msra.mxu0 0.0
    %1006 = vmatprep.subr.mxu0 0.0
    %1007 = vmatpush2.xpose.msra.mxu0 0.0
    %1008 = vmatprep.subr.mxu0 0.0
    %1009 = vmatpush2.xpose.msra.mxu0 0.0
    %1010 = vmatprep.subr.mxu0 0.0
    %1011 = vmatpush2.xpose.msra.mxu0 0.0
    %1012 = vmatprep.subr.mxu0 0.0
    %1013 = vmatpush2.xpose.msra.mxu0 0.0
    %1014 = vmatprep.subr.mxu0 0.0
    %1015 = vmatpush2.xpose.msra.mxu0 0.0
    %1016 = vmatprep.subr.mxu0 0.0
    %1017 = vmatpush2.xpose.msra.mxu0 0.0
    %1018 = vmatprep.subr.mxu0 0.0
    %1019 = vmatpush2.xpose.msra.mxu0 0.0
    %1020 = vmatprep.subr.mxu0 0.0
    %1021 = vmatpush2.xpose.msra.mxu0 0.0
    %1022 = vmatprep.subr.mxu0 0.0
    %1023 = vmatpush2.xpose.msra.mxu0 0.0
    %1024 = vmatprep.subr.mxu0 0.0
    %1025 = vmatpush2.xpose.msra.mxu0 0.0
    %1026 = vmatprep.subr.mxu0 0.0
    %1027 = vmatpush2.xpose.msra.mxu0 0.0
    %1028 = vmatprep.mubr.f32.mxu0 0.0
    %1029 = vmatmul.mubr.f32.gmra.mxu0 %v960
    %v1030 = vpop.f32.mrf.mxu0
    %v1031 = vadd.f32 0.0, %v1030
    %v1032 = vpop.f32.mrf.mxu0
    %1033 = vdwg.mxu0
    %v1034 = vmul.f32 %v953, 0.35355338
    %v1035 = vmul.f32 %v1031, 0.35355338
    %v1036 = vsel %vm218, %v1034, -inf
    %1037 = vmax.xlane.f32.xlu0 %v1036
    %v1038 = vpop.xlane.xlu0 %1037
    %v1039 = vsel %vm218, %v1035, -inf
    %1040 = vmax.xlane.f32.xlu0 %v1039
    %v1041 = vpop.xlane.xlu0 %1040
    %v1042 = vsub.f32 %v1034, %v1038
    %v1043 = vsub.f32 %v1035, %v1041
    %v1044 = vmul.f32 %v1042, 1.442695
    %v1045 = vpow.pop %v1044
    %v1046 = vmul.f32 %v1043, 1.442695
    %v1047 = vpow.pop %v1046
    %v1048 = vsel %vm218, %v1045, 0.0
    %1049 = vadd.xlane.f32.xlu0 %v1048
    %v1050 = vpop.xlane.xlu0 %1049
    %v1051 = vsel %vm218, %v1047, 0.0
    %1052 = vadd.xlane.f32.xlu0 %v1051
    %v1053 = vpop.xlane.xlu0 %1052
    %v1054 = vrcp.pop %v1050
    %v1055 = vmul.f32 %v1045, %v1054
    %v1056 = vrcp.pop %v1053
    %v1057 = vmul.f32 %v1047, %v1056
    %1058 = vrot.lane.b32.xlu0 %v209, 48
    %v1059 = vpop.permute.xlu0 %1058
    %v1062 = vsel %vm218, %v1055, 0
    %1064 = vmatprep.subr.mxu0 0.0
    %1065 = vmatpush1.msra.mxu0 0.0
    %1066 = vmatprep.subr.mxu0 0.0
    %1067 = vmatpush1.msra.mxu0 0.0
    %1068 = vmatprep.subr.mxu0 0.0
    %1069 = vmatpush1.msra.mxu0 0.0
    %1070 = vmatprep.subr.mxu0 0.0
    %1071 = vmatpush1.msra.mxu0 0.0
    %1072 = vmatprep.subr.mxu0 0.0
    %1073 = vmatpush1.msra.mxu0 0.0
    %1074 = vmatprep.subr.mxu0 0.0
    %1075 = vmatpush1.msra.mxu0 0.0
    %1076 = vmatprep.subr.mxu0 0.0
    %1077 = vmatpush1.msra.mxu0 0.0
    %1078 = vmatprep.subr.mxu0 0.0
    %1079 = vmatpush1.msra.mxu0 0.0
    %1080 = vmatprep.subr.mxu0 0.0
    %1081 = vmatpush1.msra.mxu0 0.0
    %1082 = vmatprep.subr.mxu0 0.0
    %1083 = vmatpush1.msra.mxu0 0.0
    %1084 = vmatprep.subr.mxu0 0.0
    %1085 = vmatpush1.msra.mxu0 0.0
    %1086 = vmatprep.subr.mxu0 0.0
    %1087 = vmatpush1.msra.mxu0 0.0
    %1088 = vmatprep.subr.mxu0 0.0
    %1089 = vmatpush1.msra.mxu0 0.0
    %1090 = vmatprep.subr.mxu0 0.0
    %1091 = vmatpush1.msra.mxu0 0.0
    %1092 = vmatprep.subr.mxu0 0.0
    %1093 = vmatpush1.msra.mxu0 0.0
    %1094 = vmatprep.subr.mxu0 0.0
    %1095 = vmatpush1.msra.mxu0 %v1059
    %1096 = vmatprep.subr.mxu0 0.0
    %1097 = vmatpush2.msra.mxu0 0.0
    %1098 = vmatprep.subr.mxu0 0.0
    %1099 = vmatpush2.msra.mxu0 0.0
    %1100 = vmatprep.subr.mxu0 0.0
    %1101 = vmatpush2.msra.mxu0 0.0
    %1102 = vmatprep.subr.mxu0 0.0
    %1103 = vmatpush2.msra.mxu0 0.0
    %1104 = vmatprep.subr.mxu0 0.0
    %1105 = vmatpush2.msra.mxu0 0.0
    %1106 = vmatprep.subr.mxu0 0.0
    %1107 = vmatpush2.msra.mxu0 0.0
    %1108 = vmatprep.subr.mxu0 0.0
    %1109 = vmatpush2.msra.mxu0 0.0
    %1110 = vmatprep.subr.mxu0 0.0
    %1111 = vmatpush2.msra.mxu0 0.0
    %1112 = vmatprep.subr.mxu0 0.0
    %1113 = vmatpush2.msra.mxu0 0.0
    %1114 = vmatprep.subr.mxu0 0.0
    %1115 = vmatpush2.msra.mxu0 0.0
    %1116 = vmatprep.subr.mxu0 0.0
    %1117 = vmatpush2.msra.mxu0 0.0
    %1118 = vmatprep.subr.mxu0 0.0
    %1119 = vmatpush2.msra.mxu0 0.0
    %1120 = vmatprep.subr.mxu0 0.0
    %1121 = vmatpush2.msra.mxu0 0.0
    %1122 = vmatprep.subr.mxu0 0.0
    %1123 = vmatpush2.msra.mxu0 0.0
    %1124 = vmatprep.subr.mxu0 0.0
    %1125 = vmatpush2.msra.mxu0 0.0
    %1126 = vmatprep.subr.mxu0 0.0
    %1127 = vmatpush2.msra.mxu0 0.0
    %1128 = vmatprep.mubr.f32.mxu0 0.0
    %1129 = vmatmul.mubr.f32.gmra.mxu0 %v1062
    %v1130 = vpop.f32.mrf.mxu0
    %v1131 = vadd.f32 0.0, %v1130
    %v1132 = vpop.f32.mrf.mxu0
    %1133 = vdwg.mxu0
    %1134 = vrot.lane.b32.xlu0 %v212, 48
    %v1135 = vpop.permute.xlu0 %1134
    %v1138 = vsel %vm218, %v1057, 0
    %1140 = vmatprep.subr.mxu0 0.0
    %1141 = vmatpush1.msra.mxu0 0.0
    %1142 = vmatprep.subr.mxu0 0.0
    %1143 = vmatpush1.msra.mxu0 0.0
    %1144 = vmatprep.subr.mxu0 0.0
    %1145 = vmatpush1.msra.mxu0 0.0
    %1146 = vmatprep.subr.mxu0 0.0
    %1147 = vmatpush1.msra.mxu0 0.0
    %1148 = vmatprep.subr.mxu0 0.0
    %1149 = vmatpush1.msra.mxu0 0.0
    %1150 = vmatprep.subr.mxu0 0.0
    %1151 = vmatpush1.msra.mxu0 0.0
    %1152 = vmatprep.subr.mxu0 0.0
    %1153 = vmatpush1.msra.mxu0 0.0
    %1154 = vmatprep.subr.mxu0 0.0
    %1155 = vmatpush1.msra.mxu0 0.0
    %1156 = vmatprep.subr.mxu0 0.0
    %1157 = vmatpush1.msra.mxu0 0.0
    %1158 = vmatprep.subr.mxu0 0.0
    %1159 = vmatpush1.msra.mxu0 0.0
    %1160 = vmatprep.subr.mxu0 0.0
    %1161 = vmatpush1.msra.mxu0 0.0
    %1162 = vmatprep.subr.mxu0 0.0
    %1163 = vmatpush1.msra.mxu0 0.0
    %1164 = vmatprep.subr.mxu0 0.0
    %1165 = vmatpush1.msra.mxu0 0.0
    %1166 = vmatprep.subr.mxu0 0.0
    %1167 = vmatpush1.msra.mxu0 0.0
    %1168 = vmatprep.subr.mxu0 0.0
    %1169 = vmatpush1.msra.mxu0 0.0
    %1170 = vmatprep.subr.mxu0 0.0
    %1171 = vmatpush1.msra.mxu0 %v1135
    %1172 = vmatprep.subr.mxu0 0.0
    %1173 = vmatpush2.msra.mxu0 0.0
    %1174 = vmatprep.subr.mxu0 0.0
    %1175 = vmatpush2.msra.mxu0 0.0
    %1176 = vmatprep.subr.mxu0 0.0
    %1177 = vmatpush2.msra.mxu0 0.0
    %1178 = vmatprep.subr.mxu0 0.0
    %1179 = vmatpush2.msra.mxu0 0.0
    %1180 = vmatprep.subr.mxu0 0.0
    %1181 = vmatpush2.msra.mxu0 0.0
    %1182 = vmatprep.subr.mxu0 0.0
    %1183 = vmatpush2.msra.mxu0 0.0
    %1184 = vmatprep.subr.mxu0 0.0
    %1185 = vmatpush2.msra.mxu0 0.0
    %1186 = vmatprep.subr.mxu0 0.0
    %1187 = vmatpush2.msra.mxu0 0.0
    %1188 = vmatprep.subr.mxu0 0.0
    %1189 = vmatpush2.msra.mxu0 0.0
    %1190 = vmatprep.subr.mxu0 0.0
    %1191 = vmatpush2.msra.mxu0 0.0
    %1192 = vmatprep.subr.mxu0 0.0
    %1193 = vmatpush2.msra.mxu0 0.0
    %1194 = vmatprep.subr.mxu0 0.0
    %1195 = vmatpush2.msra.mxu0 0.0
    %1196 = vmatprep.subr.mxu0 0.0
    %1197 = vmatpush2.msra.mxu0 0.0
    %1198 = vmatprep.subr.mxu0 0.0
    %1199 = vmatpush2.msra.mxu0 0.0
    %1200 = vmatprep.subr.mxu0 0.0
    %1201 = vmatpush2.msra.mxu0 0.0
    %1202 = vmatprep.subr.mxu0 0.0
    %1203 = vmatpush2.msra.mxu0 0.0
    %1204 = vmatprep.mubr.f32.mxu0 0.0
    %1205 = vmatmul.mubr.f32.gmra.mxu0 %v1138
    %v1206 = vpop.f32.mrf.mxu0
    %v1207 = vadd.f32 0.0, %v1206
    %v1208 = vpop.f32.mrf.mxu0
    %1209 = vdwg.mxu0
    %1210 = vrot.lane.b32.xlu0 %v209, 104
    %v1211 = vpop.permute.xlu0 %1210
    %1212 = vrot.lane.b32.xlu0 %v209, 72
    %v1213 = vpop.permute.xlu0 %1212
    %v1214 = vsel %vm218, %v1211, 0
    %v1216 = vsel %vm218, %v1213, 0
    %1218 = vmatprep.subr.mxu0 0.0
    %1219 = vmatpush1.xpose.msra.mxu0 0.0
    %1220 = vmatprep.subr.mxu0 0.0
    %1221 = vmatpush1.xpose.msra.mxu0 0.0
    %1222 = vmatprep.subr.mxu0 0.0
    %1223 = vmatpush1.xpose.msra.mxu0 0.0
    %1224 = vmatprep.subr.mxu0 0.0
    %1225 = vmatpush1.xpose.msra.mxu0 0.0
    %1226 = vmatprep.subr.mxu0 0.0
    %1227 = vmatpush1.xpose.msra.mxu0 0.0
    %1228 = vmatprep.subr.mxu0 0.0
    %1229 = vmatpush1.xpose.msra.mxu0 0.0
    %1230 = vmatprep.subr.mxu0 0.0
    %1231 = vmatpush1.xpose.msra.mxu0 0.0
    %1232 = vmatprep.subr.mxu0 0.0
    %1233 = vmatpush1.xpose.msra.mxu0 0.0
    %1234 = vmatprep.subr.mxu0 0.0
    %1235 = vmatpush1.xpose.msra.mxu0 0.0
    %1236 = vmatprep.subr.mxu0 0.0
    %1237 = vmatpush1.xpose.msra.mxu0 0.0
    %1238 = vmatprep.subr.mxu0 0.0
    %1239 = vmatpush1.xpose.msra.mxu0 0.0
    %1240 = vmatprep.subr.mxu0 0.0
    %1241 = vmatpush1.xpose.msra.mxu0 0.0
    %1242 = vmatprep.subr.mxu0 0.0
    %1243 = vmatpush1.xpose.msra.mxu0 0.0
    %1244 = vmatprep.subr.mxu0 0.0
    %1245 = vmatpush1.xpose.msra.mxu0 0.0
    %1246 = vmatprep.subr.mxu0 0.0
    %1247 = vmatpush1.xpose.msra.mxu0 0.0
    %1248 = vmatprep.subr.mxu0 0.0
    %1249 = vmatpush1.xpose.msra.mxu0 %v1216
    %1250 = vmatprep.subr.mxu0 0.0
    %1251 = vmatpush2.xpose.msra.mxu0 0.0
    %1252 = vmatprep.subr.mxu0 0.0
    %1253 = vmatpush2.xpose.msra.mxu0 0.0
    %1254 = vmatprep.subr.mxu0 0.0
    %1255 = vmatpush2.xpose.msra.mxu0 0.0
    %1256 = vmatprep.subr.mxu0 0.0
    %1257 = vmatpush2.xpose.msra.mxu0 0.0
    %1258 = vmatprep.subr.mxu0 0.0
    %1259 = vmatpush2.xpose.msra.mxu0 0.0
    %1260 = vmatprep.subr.mxu0 0.0
    %1261 = vmatpush2.xpose.msra.mxu0 0.0
    %1262 = vmatprep.subr.mxu0 0.0
    %1263 = vmatpush2.xpose.msra.mxu0 0.0
    %1264 = vmatprep.subr.mxu0 0.0
    %1265 = vmatpush2.xpose.msra.mxu0 0.0
    %1266 = vmatprep.subr.mxu0 0.0
    %1267 = vmatpush2.xpose.msra.mxu0 0.0
    %1268 = vmatprep.subr.mxu0 0.0
    %1269 = vmatpush2.xpose.msra.mxu0 0.0
    %1270 = vmatprep.subr.mxu0 0.0
    %1271 = vmatpush2.xpose.msra.mxu0 0.0
    %1272 = vmatprep.subr.mxu0 0.0
    %1273 = vmatpush2.xpose.msra.mxu0 0.0
    %1274 = vmatprep.subr.mxu0 0.0
    %1275 = vmatpush2.xpose.msra.mxu0 0.0
    %1276 = vmatprep.subr.mxu0 0.0
    %1277 = vmatpush2.xpose.msra.mxu0 0.0
    %1278 = vmatprep.subr.mxu0 0.0
    %1279 = vmatpush2.xpose.msra.mxu0 0.0
    %1280 = vmatprep.subr.mxu0 0.0
    %1281 = vmatpush2.xpose.msra.mxu0 0.0
    %1282 = vmatprep.mubr.f32.mxu0 0.0
    %1283 = vmatmul.mubr.f32.gmra.mxu0 %v1214
    %v1284 = vpop.f32.mrf.mxu0
    %v1285 = vadd.f32 0.0, %v1284
    %v1286 = vpop.f32.mrf.mxu0
    %1287 = vdwg.mxu0
    %1288 = vrot.lane.b32.xlu0 %v212, 104
    %v1289 = vpop.permute.xlu0 %1288
    %1290 = vrot.lane.b32.xlu0 %v212, 72
    %v1291 = vpop.permute.xlu0 %1290
    %v1292 = vsel %vm218, %v1289, 0
    %v1294 = vsel %vm218, %v1291, 0
    %1296 = vmatprep.subr.mxu0 0.0
    %1297 = vmatpush1.xpose.msra.mxu0 0.0
    %1298 = vmatprep.subr.mxu0 0.0
    %1299 = vmatpush1.xpose.msra.mxu0 0.0
    %1300 = vmatprep.subr.mxu0 0.0
    %1301 = vmatpush1.xpose.msra.mxu0 0.0
    %1302 = vmatprep.subr.mxu0 0.0
    %1303 = vmatpush1.xpose.msra.mxu0 0.0
    %1304 = vmatprep.subr.mxu0 0.0
    %1305 = vmatpush1.xpose.msra.mxu0 0.0
    %1306 = vmatprep.subr.mxu0 0.0
    %1307 = vmatpush1.xpose.msra.mxu0 0.0
    %1308 = vmatprep.subr.mxu0 0.0
    %1309 = vmatpush1.xpose.msra.mxu0 0.0
    %1310 = vmatprep.subr.mxu0 0.0
    %1311 = vmatpush1.xpose.msra.mxu0 0.0
    %1312 = vmatprep.subr.mxu0 0.0
    %1313 = vmatpush1.xpose.msra.mxu0 0.0
    %1314 = vmatprep.subr.mxu0 0.0
    %1315 = vmatpush1.xpose.msra.mxu0 0.0
    %1316 = vmatprep.subr.mxu0 0.0
    %1317 = vmatpush1.xpose.msra.mxu0 0.0
    %1318 = vmatprep.subr.mxu0 0.0
    %1319 = vmatpush1.xpose.msra.mxu0 0.0
    %1320 = vmatprep.subr.mxu0 0.0
    %1321 = vmatpush1.xpose.msra.mxu0 0.0
    %1322 = vmatprep.subr.mxu0 0.0
    %1323 = vmatpush1.xpose.msra.mxu0 0.0
    %1324 = vmatprep.subr.mxu0 0.0
    %1325 = vmatpush1.xpose.msra.mxu0 0.0
    %1326 = vmatprep.subr.mxu0 0.0
    %1327 = vmatpush1.xpose.msra.mxu0 %v1294
    %1328 = vmatprep.subr.mxu0 0.0
    %1329 = vmatpush2.xpose.msra.mxu0 0.0
    %1330 = vmatprep.subr.mxu0 0.0
    %1331 = vmatpush2.xpose.msra.mxu0 0.0
    %1332 = vmatprep.subr.mxu0 0.0
    %1333 = vmatpush2.xpose.msra.mxu0 0.0
    %1334 = vmatprep.subr.mxu0 0.0
    %1335 = vmatpush2.xpose.msra.mxu0 0.0
    %1336 = vmatprep.subr.mxu0 0.0
    %1337 = vmatpush2.xpose.msra.mxu0 0.0
    %1338 = vmatprep.subr.mxu0 0.0
    %1339 = vmatpush2.xpose.msra.mxu0 0.0
    %1340 = vmatprep.subr.mxu0 0.0
    %1341 = vmatpush2.xpose.msra.mxu0 0.0
    %1342 = vmatprep.subr.mxu0 0.0
    %1343 = vmatpush2.xpose.msra.mxu0 0.0
    %1344 = vmatprep.subr.mxu0 0.0
    %1345 = vmatpush2.xpose.msra.mxu0 0.0
    %1346 = vmatprep.subr.mxu0 0.0
    %1347 = vmatpush2.xpose.msra.mxu0 0.0
    %1348 = vmatprep.subr.mxu0 0.0
    %1349 = vmatpush2.xpose.msra.mxu0 0.0
    %1350 = vmatprep.subr.mxu0 0.0
    %1351 = vmatpush2.xpose.msra.mxu0 0.0
    %1352 = vmatprep.subr.mxu0 0.0
    %1353 = vmatpush2.xpose.msra.mxu0 0.0
    %1354 = vmatprep.subr.mxu0 0.0
    %1355 = vmatpush2.xpose.msra.mxu0 0.0
    %1356 = vmatprep.subr.mxu0 0.0
    %1357 = vmatpush2.xpose.msra.mxu0 0.0
    %1358 = vmatprep.subr.mxu0 0.0
    %1359 = vmatpush2.xpose.msra.mxu0 0.0
    %1360 = vmatprep.mubr.f32.mxu0 0.0
    %1361 = vmatmul.mubr.f32.gmra.mxu0 %v1292
    %v1362 = vpop.f32.mrf.mxu0
    %v1363 = vadd.f32 0.0, %v1362
    %v1364 = vpop.f32.mrf.mxu0
    %1365 = vdwg.mxu0
    %v1366 = vmul.f32 %v1285, 0.35355338
    %v1367 = vmul.f32 %v1363, 0.35355338
    %v1368 = vsel %vm218, %v1366, -inf
    %1369 = vmax.xlane.f32.xlu0 %v1368
    %v1370 = vpop.xlane.xlu0 %1369
    %v1371 = vsel %vm218, %v1367, -inf
    %1372 = vmax.xlane.f32.xlu0 %v1371
    %v1373 = vpop.xlane.xlu0 %1372
    %v1374 = vsub.f32 %v1366, %v1370
    %v1375 = vsub.f32 %v1367, %v1373
    %v1376 = vmul.f32 %v1374, 1.442695
    %v1377 = vpow.pop %v1376
    %v1378 = vmul.f32 %v1375, 1.442695
    %v1379 = vpow.pop %v1378
    %v1380 = vsel %vm218, %v1377, 0.0
    %1381 = vadd.xlane.f32.xlu0 %v1380
    %v1382 = vpop.xlane.xlu0 %1381
    %v1383 = vsel %vm218, %v1379, 0.0
    %1384 = vadd.xlane.f32.xlu0 %v1383
    %v1385 = vpop.xlane.xlu0 %1384
    %v1386 = vrcp.pop %v1382
    %v1387 = vmul.f32 %v1377, %v1386
    %v1388 = vrcp.pop %v1385
    %v1389 = vmul.f32 %v1379, %v1388
    %1390 = vrot.lane.b32.xlu0 %v209, 40
    %v1391 = vpop.permute.xlu0 %1390
    %v1394 = vsel %vm218, %v1387, 0
    %1396 = vmatprep.subr.mxu0 0.0
    %1397 = vmatpush1.msra.mxu0 0.0
    %1398 = vmatprep.subr.mxu0 0.0
    %1399 = vmatpush1.msra.mxu0 0.0
    %1400 = vmatprep.subr.mxu0 0.0
    %1401 = vmatpush1.msra.mxu0 0.0
    %1402 = vmatprep.subr.mxu0 0.0
    %1403 = vmatpush1.msra.mxu0 0.0
    %1404 = vmatprep.subr.mxu0 0.0
    %1405 = vmatpush1.msra.mxu0 0.0
    %1406 = vmatprep.subr.mxu0 0.0
    %1407 = vmatpush1.msra.mxu0 0.0
    %1408 = vmatprep.subr.mxu0 0.0
    %1409 = vmatpush1.msra.mxu0 0.0
    %1410 = vmatprep.subr.mxu0 0.0
    %1411 = vmatpush1.msra.mxu0 0.0
    %1412 = vmatprep.subr.mxu0 0.0
    %1413 = vmatpush1.msra.mxu0 0.0
    %1414 = vmatprep.subr.mxu0 0.0
    %1415 = vmatpush1.msra.mxu0 0.0
    %1416 = vmatprep.subr.mxu0 0.0
    %1417 = vmatpush1.msra.mxu0 0.0
    %1418 = vmatprep.subr.mxu0 0.0
    %1419 = vmatpush1.msra.mxu0 0.0
    %1420 = vmatprep.subr.mxu0 0.0
    %1421 = vmatpush1.msra.mxu0 0.0
    %1422 = vmatprep.subr.mxu0 0.0
    %1423 = vmatpush1.msra.mxu0 0.0
    %1424 = vmatprep.subr.mxu0 0.0
    %1425 = vmatpush1.msra.mxu0 0.0
    %1426 = vmatprep.subr.mxu0 0.0
    %1427 = vmatpush1.msra.mxu0 %v1391
    %1428 = vmatprep.subr.mxu0 0.0
    %1429 = vmatpush2.msra.mxu0 0.0
    %1430 = vmatprep.subr.mxu0 0.0
    %1431 = vmatpush2.msra.mxu0 0.0
    %1432 = vmatprep.subr.mxu0 0.0
    %1433 = vmatpush2.msra.mxu0 0.0
    %1434 = vmatprep.subr.mxu0 0.0
    %1435 = vmatpush2.msra.mxu0 0.0
    %1436 = vmatprep.subr.mxu0 0.0
    %1437 = vmatpush2.msra.mxu0 0.0
    %1438 = vmatprep.subr.mxu0 0.0
    %1439 = vmatpush2.msra.mxu0 0.0
    %1440 = vmatprep.subr.mxu0 0.0
    %1441 = vmatpush2.msra.mxu0 0.0
    %1442 = vmatprep.subr.mxu0 0.0
    %1443 = vmatpush2.msra.mxu0 0.0
    %1444 = vmatprep.subr.mxu0 0.0
    %1445 = vmatpush2.msra.mxu0 0.0
    %1446 = vmatprep.subr.mxu0 0.0
    %1447 = vmatpush2.msra.mxu0 0.0
    %1448 = vmatprep.subr.mxu0 0.0
    %1449 = vmatpush2.msra.mxu0 0.0
    %1450 = vmatprep.subr.mxu0 0.0
    %1451 = vmatpush2.msra.mxu0 0.0
    %1452 = vmatprep.subr.mxu0 0.0
    %1453 = vmatpush2.msra.mxu0 0.0
    %1454 = vmatprep.subr.mxu0 0.0
    %1455 = vmatpush2.msra.mxu0 0.0
    %1456 = vmatprep.subr.mxu0 0.0
    %1457 = vmatpush2.msra.mxu0 0.0
    %1458 = vmatprep.subr.mxu0 0.0
    %1459 = vmatpush2.msra.mxu0 0.0
    %1460 = vmatprep.mubr.f32.mxu0 0.0
    %1461 = vmatmul.mubr.f32.gmra.mxu0 %v1394
    %v1462 = vpop.f32.mrf.mxu0
    %v1463 = vadd.f32 0.0, %v1462
    %v1464 = vpop.f32.mrf.mxu0
    %1465 = vdwg.mxu0
    %1466 = vrot.lane.b32.xlu0 %v212, 40
    %v1467 = vpop.permute.xlu0 %1466
    %v1470 = vsel %vm218, %v1389, 0
    %1472 = vmatprep.subr.mxu0 0.0
    %1473 = vmatpush1.msra.mxu0 0.0
    %1474 = vmatprep.subr.mxu0 0.0
    %1475 = vmatpush1.msra.mxu0 0.0
    %1476 = vmatprep.subr.mxu0 0.0
    %1477 = vmatpush1.msra.mxu0 0.0
    %1478 = vmatprep.subr.mxu0 0.0
    %1479 = vmatpush1.msra.mxu0 0.0
    %1480 = vmatprep.subr.mxu0 0.0
    %1481 = vmatpush1.msra.mxu0 0.0
    %1482 = vmatprep.subr.mxu0 0.0
    %1483 = vmatpush1.msra.mxu0 0.0
    %1484 = vmatprep.subr.mxu0 0.0
    %1485 = vmatpush1.msra.mxu0 0.0
    %1486 = vmatprep.subr.mxu0 0.0
    %1487 = vmatpush1.msra.mxu0 0.0
    %1488 = vmatprep.subr.mxu0 0.0
    %1489 = vmatpush1.msra.mxu0 0.0
    %1490 = vmatprep.subr.mxu0 0.0
    %1491 = vmatpush1.msra.mxu0 0.0
    %1492 = vmatprep.subr.mxu0 0.0
    %1493 = vmatpush1.msra.mxu0 0.0
    %1494 = vmatprep.subr.mxu0 0.0
    %1495 = vmatpush1.msra.mxu0 0.0
    %1496 = vmatprep.subr.mxu0 0.0
    %1497 = vmatpush1.msra.mxu0 0.0
    %1498 = vmatprep.subr.mxu0 0.0
    %1499 = vmatpush1.msra.mxu0 0.0
    %1500 = vmatprep.subr.mxu0 0.0
    %1501 = vmatpush1.msra.mxu0 0.0
    %1502 = vmatprep.subr.mxu0 0.0
    %1503 = vmatpush1.msra.mxu0 %v1467
    %1504 = vmatprep.subr.mxu0 0.0
    %1505 = vmatpush2.msra.mxu0 0.0
    %1506 = vmatprep.subr.mxu0 0.0
    %1507 = vmatpush2.msra.mxu0 0.0
    %1508 = vmatprep.subr.mxu0 0.0
    %1509 = vmatpush2.msra.mxu0 0.0
    %1510 = vmatprep.subr.mxu0 0.0
    %1511 = vmatpush2.msra.mxu0 0.0
    %1512 = vmatprep.subr.mxu0 0.0
    %1513 = vmatpush2.msra.mxu0 0.0
    %1514 = vmatprep.subr.mxu0 0.0
    %1515 = vmatpush2.msra.mxu0 0.0
    %1516 = vmatprep.subr.mxu0 0.0
    %1517 = vmatpush2.msra.mxu0 0.0
    %1518 = vmatprep.subr.mxu0 0.0
    %1519 = vmatpush2.msra.mxu0 0.0
    %1520 = vmatprep.subr.mxu0 0.0
    %1521 = vmatpush2.msra.mxu0 0.0
    %1522 = vmatprep.subr.mxu0 0.0
    %1523 = vmatpush2.msra.mxu0 0.0
    %1524 = vmatprep.subr.mxu0 0.0
    %1525 = vmatpush2.msra.mxu0 0.0
    %1526 = vmatprep.subr.mxu0 0.0
    %1527 = vmatpush2.msra.mxu0 0.0
    %1528 = vmatprep.subr.mxu0 0.0
    %1529 = vmatpush2.msra.mxu0 0.0
    %1530 = vmatprep.subr.mxu0 0.0
    %1531 = vmatpush2.msra.mxu0 0.0
    %1532 = vmatprep.subr.mxu0 0.0
    %1533 = vmatpush2.msra.mxu0 0.0
    %1534 = vmatprep.subr.mxu0 0.0
    %1535 = vmatpush2.msra.mxu0 0.0
    %1536 = vmatprep.mubr.f32.mxu0 0.0
    %1537 = vmatmul.mubr.f32.gmra.mxu0 %v1470
    %v1538 = vpop.f32.mrf.mxu0
    %v1539 = vadd.f32 0.0, %v1538
    %v1540 = vpop.f32.mrf.mxu0
    %1541 = vdwg.mxu0
    %1544 = vrot.lane.b32.xlu0 %v799, 8
    %v1545 = vpop.permute.xlu0 %1544
    %1546 = vrot.lane.b32.xlu0 %v875, 8
    %v1547 = vpop.permute.xlu0 %1546
    %1552 = vrot.lane.b32.xlu0 %v1131, 16
    %v1553 = vpop.permute.xlu0 %1552
    %1554 = vrot.lane.b32.xlu0 %v1207, 16
    %v1555 = vpop.permute.xlu0 %1554
    %1560 = vrot.lane.b32.xlu0 %v1463, 24
    %v1561 = vpop.permute.xlu0 %1560
    %1562 = vrot.lane.b32.xlu0 %v1539, 24
    %v1563 = vpop.permute.xlu0 %1562
    %v1566 = vsel %vm218, %v467, %v1545
    %v1567 = vsel %vm218, %v543, %v1547
    %vm1568 = vcmask 130048
    %v1569 = vsel %vm1568, %v1566, %v1553
    %v1570 = vsel %vm1568, %v1567, %v1555
    %vm1571 = vcmask 195584
    %v1572 = vsel %vm1571, %v1569, %v1561
    %v1573 = vsel %vm1571, %v1570, %v1563
    %v1574 = vpack.c.bf16 %v1573, %v1572
    %v1575 = vld [vmem:[%s4] sm:$0xf]
    %v1576 = vld [vmem:[%s4 + $0x4] sm:$0xf]
    %v1577 = vld [vmem:[%s4 + $0x8] sm:$0xf]
    %v1578 = vld [vmem:[%s4 + $0xc] sm:$0xf]
    %v1579 = vlaneseq
    %v1580 = vshrl.u32 %v1579, 7
    %v1581 = vsub.s32 0, %v1580
    %v1582 = vrot.slane %v35, %v1581
    %v1587 = vunpack.c.l.b16 %v1575
    %v1588 = vunpack.c.l.b16 %v1576
    %v1589 = vunpack.c.l.b16 %v1577
    %v1590 = vunpack.c.l.b16 %v1578
    %v1591 = vpack.c.b16 %v1588, %v1587
    %v1592 = vpack.c.b16 %v1590, %v1589
    %v1596 = vsel %vm170, %v1574, 0
    %1598 = vmatprep.subr.bf16.mxu0 0
    %1599 = vmatpush1.bf16.msra.mxu0 0
    %1600 = vmatprep.subr.bf16.mxu0 0
    %1601 = vmatpush1.bf16.msra.mxu0 0
    %1602 = vmatprep.subr.bf16.mxu0 0
    %1603 = vmatpush1.bf16.msra.mxu0 0
    %1604 = vmatprep.subr.bf16.mxu0 0
    %1605 = vmatpush1.bf16.msra.mxu0 0
    %1606 = vmatprep.subr.bf16.mxu0 0
    %1607 = vmatpush1.bf16.msra.mxu0 0
    %1608 = vmatprep.subr.bf16.mxu0 0
    %1609 = vmatpush1.bf16.msra.mxu0 0
    %1610 = vmatprep.subr.bf16.mxu0 0
    %1611 = vmatpush1.bf16.msra.mxu0 %v1592
    %1612 = vmatprep.subr.bf16.mxu0 0
    %1613 = vmatpush1.bf16.msra.mxu0 %v1591
    %1614 = vmatprep.subr.bf16.mxu0 0
    %1615 = vmatpush2.bf16.msra.mxu0 0
    %1616 = vmatprep.subr.bf16.mxu0 0
    %1617 = vmatpush2.bf16.msra.mxu0 0
    %1618 = vmatprep.subr.bf16.mxu0 0
    %1619 = vmatpush2.bf16.msra.mxu0 0
    %1620 = vmatprep.subr.bf16.mxu0 0
    %1621 = vmatpush2.bf16.msra.mxu0 0
    %1622 = vmatprep.subr.bf16.mxu0 0
    %1623 = vmatpush2.bf16.msra.mxu0 0
    %1624 = vmatprep.subr.bf16.mxu0 0
    %1625 = vmatpush2.bf16.msra.mxu0 0
    %1626 = vmatprep.subr.bf16.mxu0 0
    %1627 = vmatpush2.bf16.msra.mxu0 0
    %1628 = vmatprep.subr.bf16.mxu0 0
    %1629 = vmatpush2.bf16.msra.mxu0 0
    %1630 = vmatprep.mubr.bf16.mxu0 0
    %1631 = vmatmul.mubr.bf16.gmra.mxu0 %v1596
    %v1632 = vpop.f32.mrf.mxu0
    %v1633 = vadd.f32 %v1582, %v1632
    %v1634 = vpop.f32.mrf.mxu0
    %v1635 = vpop.f32.mrf.mxu0
    %v1636 = vadd.f32 %v1582, %v1635
    %v1637 = vpop.f32.mrf.mxu0
    %1638 = vdwg.mxu0
    %v1639 = vadd.f32 %v141, %v1633
    %v1640 = vadd.f32 %v146, %v1636
    %v1641 = vsel %vm170, %v1639, 0.0
    %1642 = vadd.xlane.f32.xlu0 %v1641
    %v1643 = vpop.xlane.xlu0 %1642
    %v1644 = vsel %vm170, %v1640, 0.0
    %1645 = vadd.xlane.f32.xlu0 %v1644
    %v1646 = vpop.xlane.xlu0 %1645
    %v1647 = vrcp.pop 32.0
    %v1648 = vmul.f32 %v1643, %v1647
    %v1649 = vmul.f32 %v1646, %v1647
    %v1650 = vsub.f32 %v1639, %v1648
    %v1651 = vsub.f32 %v1640, %v1649
    %v1652 = vmul.f32 %v1650, %v1650
    %v1653 = vmul.f32 %v1651, %v1651
    %v1654 = vsel %vm170, %v1652, 0.0
    %1655 = vadd.xlane.f32.xlu0 %v1654
    %v1656 = vpop.xlane.xlu0 %1655
    %v1657 = vsel %vm170, %v1653, 0.0
    %1658 = vadd.xlane.f32.xlu0 %v1657
    %v1659 = vpop.xlane.xlu0 %1658
    %v1660 = vmul.f32 %v1656, %v1647
    %v1661 = vmul.f32 %v1659, %v1647
    %v1662 = vadd.f32 %v1660, 1e-05
    %v1663 = vadd.f32 %v1661, 1e-05
    %v1664 = vrsqrt.pop %v1662
    %v1665 = vrsqrt.pop %v1663
    %v1666 = vmul.f32 %v1650, %v1664
    %v1667 = vmul.f32 %v1651, %v1665
    %v1668 = vlaneseq
    %v1669 = vshrl.u32 %v1668, 7
    %v1670 = vsub.s32 0, %v1669
    %v1671 = vrot.slane %v36, %v1670
    %v1672 = vmul.f32 %v1666, %v1671
    %v1673 = vmul.f32 %v1667, %v1671
    %v1674 = vlaneseq
    %v1675 = vshrl.u32 %v1674, 7
    %v1676 = vsub.s32 0, %v1675
    %v1677 = vrot.slane %v37, %v1676
    %v1678 = vadd.f32 %v1672, %v1677
    %v1679 = vadd.f32 %v1673, %v1677
    %v1680 = vpack.c.bf16 %v1679, %v1678
    %v1681 = vld [vmem:[%s5] sm:$0xf]
    %v1682 = vld [vmem:[%s5 + $0x4] sm:$0xf]
    %v1683 = vld [vmem:[%s5 + $0x8] sm:$0xf]
    %v1684 = vld [vmem:[%s5 + $0xc] sm:$0xf]
    %v1685 = vlaneseq
    %v1686 = vshrl.u32 %v1685, 7
    %v1687 = vsub.s32 0, %v1686
    %v1688 = vrot.slane %v38, %v1687
    %v1693 = vunpack.c.l.b16 %v1681
    %v1694 = vunpack.c.l.b16 %v1682
    %v1695 = vunpack.c.l.b16 %v1683
    %v1696 = vunpack.c.l.b16 %v1684
    %v1697 = vpack.c.b16 %v1694, %v1693
    %v1698 = vpack.c.b16 %v1696, %v1695
    %v1702 = vsel %vm170, %v1680, 0
    %1704 = vmatprep.subr.bf16.mxu0 0
    %1705 = vmatpush1.bf16.msra.mxu0 0
    %1706 = vmatprep.subr.bf16.mxu0 0
    %1707 = vmatpush1.bf16.msra.mxu0 0
    %1708 = vmatprep.subr.bf16.mxu0 0
    %1709 = vmatpush1.bf16.msra.mxu0 0
    %1710 = vmatprep.subr.bf16.mxu0 0
    %1711 = vmatpush1.bf16.msra.mxu0 0
    %1712 = vmatprep.subr.bf16.mxu0 0
    %1713 = vmatpush1.bf16.msra.mxu0 0
    %1714 = vmatprep.subr.bf16.mxu0 0
    %1715 = vmatpush1.bf16.msra.mxu0 0
    %1716 = vmatprep.subr.bf16.mxu0 0
    %1717 = vmatpush1.bf16.msra.mxu0 %v1698
    %1718 = vmatprep.subr.bf16.mxu0 0
    %1719 = vmatpush1.bf16.msra.mxu0 %v1697
    %1720 = vmatprep.subr.bf16.mxu0 0
    %1721 = vmatpush2.bf16.msra.mxu0 0
    %1722 = vmatprep.subr.bf16.mxu0 0
    %1723 = vmatpush2.bf16.msra.mxu0 0
    %1724 = vmatprep.subr.bf16.mxu0 0
    %1725 = vmatpush2.bf16.msra.mxu0 0
    %1726 = vmatprep.subr.bf16.mxu0 0
    %1727 = vmatpush2.bf16.msra.mxu0 0
    %1728 = vmatprep.subr.bf16.mxu0 0
    %1729 = vmatpush2.bf16.msra.mxu0 0
    %1730 = vmatprep.subr.bf16.mxu0 0
    %1731 = vmatpush2.bf16.msra.mxu0 0
    %1732 = vmatprep.subr.bf16.mxu0 0
    %1733 = vmatpush2.bf16.msra.mxu0 0
    %1734 = vmatprep.subr.bf16.mxu0 0
    %1735 = vmatpush2.bf16.msra.mxu0 0
    %1736 = vmatprep.mubr.bf16.mxu0 0
    %1737 = vmatmul.mubr.bf16.gmra.mxu0 %v1702
    %v1738 = vpop.f32.mrf.mxu0
    %v1739 = vadd.f32 %v1688, %v1738
    %v1740 = vpop.f32.mrf.mxu0
    %v1741 = vpop.f32.mrf.mxu0
    %v1742 = vadd.f32 %v1688, %v1741
    %v1743 = vpop.f32.mrf.mxu0
    %1744 = vdwg.mxu0
    %v1745 = vmul.f32 %v1739, %v1739
    %v1746 = vmul.f32 %v1742, %v1742
    %v1747 = vmul.f32 %v1739, %v1745
    %v1748 = vmul.f32 %v1742, %v1746
    %v1749 = vmul.f32 %v1747, 0.044715
    %v1750 = vmul.f32 %v1748, 0.044715
    %v1751 = vadd.f32 %v1739, %v1749
    %v1752 = vadd.f32 %v1742, %v1750
    %v1753 = vmul.f32 %v1751, 0.7978846
    %v1754 = vmul.f32 %v1752, 0.7978846
    %v1755 = vtanh.pop %v1753
    %v1756 = vtanh.pop %v1754
    %v1757 = vadd.f32 %v1755, 1.0
    %v1758 = vadd.f32 %v1756, 1.0
    %v1759 = vmul.f32 %v1757, 0.5
    %v1760 = vmul.f32 %v1758, 0.5
    %v1761 = vmul.f32 %v1739, %v1759
    %v1762 = vmul.f32 %v1742, %v1760
    %v1763 = vpack.c.bf16 %v1762, %v1761
    %v1764 = vld [vmem:[%s6] sm:$0xf]
    %v1765 = vld [vmem:[%s6 + $0x4] sm:$0xf]
    %v1766 = vld [vmem:[%s6 + $0x8] sm:$0xf]
    %v1767 = vld [vmem:[%s6 + $0xc] sm:$0xf]
    %v1768 = vld [vmem:[%s6 + $0x10] sm:$0xf]
    %v1769 = vld [vmem:[%s6 + $0x14] sm:$0xf]
    %v1770 = vld [vmem:[%s6 + $0x18] sm:$0xf]
    %v1771 = vld [vmem:[%s6 + $0x1c] sm:$0xf]
    %v1772 = vlaneseq
    %v1773 = vshrl.u32 %v1772, 7
    %v1774 = vsub.s32 0, %v1773
    %v1775 = vrot.slane %v39, %v1774
    %v1784 = vunpack.c.l.b16 %v1764
    %v1785 = vunpack.c.l.b16 %v1765
    %v1786 = vunpack.c.l.b16 %v1766
    %v1787 = vunpack.c.l.b16 %v1767
    %v1788 = vunpack.c.l.b16 %v1768
    %v1789 = vunpack.c.l.b16 %v1769
    %v1790 = vunpack.c.l.b16 %v1770
    %v1791 = vunpack.c.l.b16 %v1771
    %v1792 = vpack.c.b16 %v1785, %v1784
    %v1793 = vpack.c.b16 %v1787, %v1786
    %v1794 = vpack.c.b16 %v1789, %v1788
    %v1795 = vpack.c.b16 %v1791, %v1790
    %v1801 = vsel %vm67, %v1763, 0
    %1803 = vmatprep.subr.bf16.mxu0 0
    %1804 = vmatpush1.bf16.msra.mxu0 0
    %1805 = vmatprep.subr.bf16.mxu0 0
    %1806 = vmatpush1.bf16.msra.mxu0 0
    %1807 = vmatprep.subr.bf16.mxu0 0
    %1808 = vmatpush1.bf16.msra.mxu0 0
    %1809 = vmatprep.subr.bf16.mxu0 0
    %1810 = vmatpush1.bf16.msra.mxu0 0
    %1811 = vmatprep.subr.bf16.mxu0 0
    %1812 = vmatpush1.bf16.msra.mxu0 %v1795
    %1813 = vmatprep.subr.bf16.mxu0 0
    %1814 = vmatpush1.bf16.msra.mxu0 %v1794
    %1815 = vmatprep.subr.bf16.mxu0 0
    %1816 = vmatpush1.bf16.msra.mxu0 %v1793
    %1817 = vmatprep.subr.bf16.mxu0 0
    %1818 = vmatpush1.bf16.msra.mxu0 %v1792
    %1819 = vmatprep.subr.bf16.mxu0 0
    %1820 = vmatpush2.bf16.msra.mxu0 0
    %1821 = vmatprep.subr.bf16.mxu0 0
    %1822 = vmatpush2.bf16.msra.mxu0 0
    %1823 = vmatprep.subr.bf16.mxu0 0
    %1824 = vmatpush2.bf16.msra.mxu0 0
    %1825 = vmatprep.subr.bf16.mxu0 0
    %1826 = vmatpush2.bf16.msra.mxu0 0
    %1827 = vmatprep.subr.bf16.mxu0 0
    %1828 = vmatpush2.bf16.msra.mxu0 0
    %1829 = vmatprep.subr.bf16.mxu0 0
    %1830 = vmatpush2.bf16.msra.mxu0 0
    %1831 = vmatprep.subr.bf16.mxu0 0
    %1832 = vmatpush2.bf16.msra.mxu0 0
    %1833 = vmatprep.subr.bf16.mxu0 0
    %1834 = vmatpush2.bf16.msra.mxu0 0
    %1835 = vmatprep.mubr.bf16.mxu0 0
    %1836 = vmatmul.mubr.bf16.gmra.mxu0 %v1801
    %v1837 = vpop.f32.mrf.mxu0
    %v1838 = vadd.f32 %v1775, %v1837
    %v1839 = vpop.f32.mrf.mxu0
    %v1840 = vpop.f32.mrf.mxu0
    %v1841 = vadd.f32 %v1775, %v1840
    %v1842 = vpop.f32.mrf.mxu0
    %1843 = vdwg.mxu0
    %v1844 = vadd.f32 %v1678, %v1838
    %v1845 = vadd.f32 %v1679, %v1841
    %v1846 = vsel %vm170, %v1844, 0.0
    %1847 = vadd.xlane.f32.xlu0 %v1846
    %v1848 = vpop.xlane.xlu0 %1847
    %v1849 = vsel %vm170, %v1845, 0.0
    %1850 = vadd.xlane.f32.xlu0 %v1849
    %v1851 = vpop.xlane.xlu0 %1850
    %v1852 = vmul.f32 %v1848, %v1647
    %v1853 = vmul.f32 %v1851, %v1647
    %v1854 = vsub.f32 %v1844, %v1852
    %v1855 = vsub.f32 %v1845, %v1853
    %v1856 = vmul.f32 %v1854, %v1854
    %v1857 = vmul.f32 %v1855, %v1855
    %v1858 = vsel %vm170, %v1856, 0.0
    %1859 = vadd.xlane.f32.xlu0 %v1858
    %v1860 = vpop.xlane.xlu0 %1859
    %v1861 = vsel %vm170, %v1857, 0.0
    %1862 = vadd.xlane.f32.xlu0 %v1861
    %v1863 = vpop.xlane.xlu0 %1862
    %v1864 = vmul.f32 %v1860, %v1647
    %v1865 = vmul.f32 %v1863, %v1647
    %v1866 = vadd.f32 %v1864, 1e-05
    %v1867 = vadd.f32 %v1865, 1e-05
    %v1868 = vrsqrt.pop %v1866
    %v1869 = vrsqrt.pop %v1867
    %v1870 = vmul.f32 %v1854, %v1868
    %v1871 = vmul.f32 %v1855, %v1869
    %v1872 = vlaneseq
    %v1873 = vshrl.u32 %v1872, 7
    %v1874 = vsub.s32 0, %v1873
    %v1875 = vrot.slane %v40, %v1874
    %v1876 = vmul.f32 %v1870, %v1875
    %v1877 = vmul.f32 %v1871, %v1875
    %v1878 = vlaneseq
    %v1879 = vshrl.u32 %v1878, 7
    %v1880 = vsub.s32 0, %v1879
    %v1881 = vrot.slane %v41, %v1880
    %v1882 = vadd.f32 %v1876, %v1881
    %v1883 = vadd.f32 %v1877, %v1881
    %v1884 = vpack.c.bf16 %v1883, %v1882
    %v1885 = vld [vmem:[%s7] sm:$0xf]
    %v1886 = vld [vmem:[%s7 + $0x4] sm:$0xf]
    %v1887 = vld [vmem:[%s7 + $0x8] sm:$0xf]
    %v1888 = vld [vmem:[%s7 + $0xc] sm:$0xf]
    %v1889 = vlaneseq
    %v1890 = vshrl.u32 %v1889, 7
    %v1891 = vsub.s32 0, %v1890
    %v1892 = vrot.slane %v42, %v1891
    %v1897 = vunpack.c.l.b16 %v1885
    %v1898 = vunpack.c.l.b16 %v1886
    %v1899 = vunpack.c.l.b16 %v1887
    %v1900 = vunpack.c.l.b16 %v1888
    %v1901 = vpack.c.b16 %v1898, %v1897
    %v1902 = vpack.c.b16 %v1900, %v1899
    %v1906 = vsel %vm170, %v1884, 0
    %1908 = vmatprep.subr.bf16.mxu0 0
    %1909 = vmatpush1.bf16.msra.mxu0 0
    %1910 = vmatprep.subr.bf16.mxu0 0
    %1911 = vmatpush1.bf16.msra.mxu0 0
    %1912 = vmatprep.subr.bf16.mxu0 0
    %1913 = vmatpush1.bf16.msra.mxu0 0
    %1914 = vmatprep.subr.bf16.mxu0 0
    %1915 = vmatpush1.bf16.msra.mxu0 0
    %1916 = vmatprep.subr.bf16.mxu0 0
    %1917 = vmatpush1.bf16.msra.mxu0 0
    %1918 = vmatprep.subr.bf16.mxu0 0
    %1919 = vmatpush1.bf16.msra.mxu0 0
    %1920 = vmatprep.subr.bf16.mxu0 0
    %1921 = vmatpush1.bf16.msra.mxu0 %v1902
    %1922 = vmatprep.subr.bf16.mxu0 0
    %1923 = vmatpush1.bf16.msra.mxu0 %v1901
    %1924 = vmatprep.subr.bf16.mxu0 0
    %1925 = vmatpush2.bf16.msra.mxu0 0
    %1926 = vmatprep.subr.bf16.mxu0 0
    %1927 = vmatpush2.bf16.msra.mxu0 0
    %1928 = vmatprep.subr.bf16.mxu0 0
    %1929 = vmatpush2.bf16.msra.mxu0 0
    %1930 = vmatprep.subr.bf16.mxu0 0
    %1931 = vmatpush2.bf16.msra.mxu0 0
    %1932 = vmatprep.subr.bf16.mxu0 0
    %1933 = vmatpush2.bf16.msra.mxu0 0
    %1934 = vmatprep.subr.bf16.mxu0 0
    %1935 = vmatpush2.bf16.msra.mxu0 0
    %1936 = vmatprep.subr.bf16.mxu0 0
    %1937 = vmatpush2.bf16.msra.mxu0 0
    %1938 = vmatprep.subr.bf16.mxu0 0
    %1939 = vmatpush2.bf16.msra.mxu0 0
    %1940 = vmatprep.mubr.bf16.mxu0 0
    %1941 = vmatmul.mubr.bf16.gmra.mxu0 %v1906
    %v1942 = vpop.f32.mrf.mxu0
    %v1943 = vadd.f32 %v1892, %v1942
    %v1944 = vpop.f32.mrf.mxu0
    %v1945 = vpop.f32.mrf.mxu0
    %v1946 = vadd.f32 %v1892, %v1945
    %v1947 = vpop.f32.mrf.mxu0
    %1948 = vdwg.mxu0
    %1949 = vst [vmem:[#allocation2] sm:$0xff] %v1943
    %1950 = vst [vmem:[#allocation2 + $0x8] sm:$0xff] %v1946
    // Predicated region
    $region38: #{_bert_forward.1} parent=1 // pred_check
      _
    $region39: #{_bert_forward.1} parent=1 // pred_check_branch
      %1952 = sbr.rel (0) target = $region41
    $region40: #{_bert_forward.1} parent=1 // pred_region
      %s1954 = ssub.s32 256, 256
      %1955 = vsyncadd [#allocation3], %s1954
      %s1956 = sshll.u32 [#allocation2], 4
      %s1957 = int_to_ptr.vmem [resolvable:$true] %s1956
      %1962 = dma.vmem_to_hbm [thread:$0]  %s1957, 256, %s9, [#allocation3], 128, 128, 8
    $region41: #{_bert_forward.1} parent=1 // pred_fallthru
      _
    // Predicated region
    $region42: #{_bert_forward.1} parent=1 // pred_check
      _
    $region43: #{_bert_forward.1} parent=1 // pred_check_branch
      %1964 = sbr.rel (0) target = $region45
    $region44: #{_bert_forward.1} parent=1 // pred_region
      %1965 = dma.done [#allocation3], 256
    $region45: #{_bert_forward.1} parent=1 // pred_fallthru
      _
    %1966 = vsyncpa [#allocation3], 1

</llo_original>
